<compile_context>
chip_gen: v6e
topology: v6e:2x2x1
jax: 0.10.0
libtpu: 0.0.40
codegen_flags: <defaults>
</compile_context>

<pallas_src>
import math

import jax
import jax.numpy as jnp
from jax.experimental import pallas as pl
from jax.experimental.pallas import tpu as pltpu

_BN_EPS = 1e-5


# ----------------------------------------------------------------------------
# Fused Pallas kernel: [banded conv3x3 -> BN(batch stats) -> ReLU] x 2
# ----------------------------------------------------------------------------
def _make_conv_bn_relu_x2_kernel(n_px):
    """Builds the fused kernel. n_px = N*H*W = samples per channel for BN."""
    inv_n = 1.0 / float(n_px)

    def kernel(xp_ref, wb1_ref, wb2_ref, g1_ref, be1_ref, g2_ref, be2_ref,
               p_ref, out_ref):
        n, hp2, _ = xp_ref.shape
        h = hp2 - 2
        m, lout = out_ref.shape            # m = N*H rows, lout = W*Cout lanes
        cdt = xp_ref.dtype                 # MXU feed dtype (bf16)

        def banded_conv3x3(xp, wb_ref):
            # xp: (N, H+2, Lin) H-padded values; wb_ref: (3, Lin, Lout) banded taps.
            lin = xp.shape[-1]
            acc = jnp.zeros((m, lout), jnp.float32)
            for ky in range(3):            # unrolled: 3 MXU matmuls, K = Lin
                acc = acc + jnp.dot(xp[:, ky:ky + h, :].reshape(m, lin),
                                    wb_ref[ky],
                                    preferred_element_type=jnp.float32)
            return acc

        def bn_relu(y, g_ref, be_ref):
            # One-pass batch stats; per-channel pooling over the W-tiled lane
            # axis via the 0/1 matrix p_ref (keeps everything lane-dense).
            csum = jnp.sum(y, axis=0, keepdims=True)               # (1, Lout)
            csq = jnp.sum(y * y, axis=0, keepdims=True)            # (1, Lout)
            mean = jnp.dot(csum, p_ref[...],
                           preferred_element_type=jnp.float32) * inv_n
            ex2 = jnp.dot(csq, p_ref[...],
                          preferred_element_type=jnp.float32) * inv_n
            var = jnp.maximum(ex2 - mean * mean, 0.0)
            yhat = (y - mean) * jax.lax.rsqrt(var + _BN_EPS)
            return jnp.maximum(yhat * g_ref[...] + be_ref[...], 0.0)

        # ---- stage 1 ----
        y1 = bn_relu(banded_conv3x3(xp_ref[...], wb1_ref), g1_ref, be1_ref)

        # ---- stage 2: H-pad y1 as values (no zero-filled VMEM scratch) ----
        y1_img = y1.reshape(n, h, lout).astype(cdt)
        zrow = jnp.zeros((n, 1, lout), cdt)
        xp2 = jnp.concatenate([zrow, y1_img, zrow], axis=1)        # (N, H+2, Lout)
        y2 = bn_relu(banded_conv3x3(xp2, wb2_ref), g2_ref, be2_ref)

        out_ref[...] = y2.astype(out_ref.dtype)

    return kernel


# ----------------------------------------------------------------------------
# Host-side weight / layout preparation (plain JAX, runs once per call)
# ----------------------------------------------------------------------------
def _band_weights(w_oihw, width):
    """PyTorch (Cout,Cin,3,3) conv weight -> (3, W*Cin, W*Cout) banded matrices.

    band[ky, u*Cin + c, w*Cout + o] = w_oihw[o, c, ky, u - w + 1] when |u-w| <= 1
    (zero otherwise), so a row-slab of the lane-flattened input multiplied by
    band[ky] and summed over ky is exactly the 3x3 cross-correlation with
    padding=1 (the horizontal border taps are folded into the band as zeros).
    """
    c_out, c_in, kh, kw = w_oihw.shape
    w_t = jnp.transpose(w_oihw, (2, 3, 1, 0)).astype(jnp.float32)  # (kh,kw,Cin,Cout)
    u = jnp.arange(width)
    wv = jnp.arange(width)
    dx = jnp.arange(kw)
    ind = (u[None, :, None] == wv[None, None, :] + dx[:, None, None] - 1
           ).astype(jnp.float32)                                    # (kw, W, W)
    band = jnp.einsum("xuw,yxco->yucwo", ind, w_t)                  # (kh,W,Cin,W,Cout)
    return band.reshape(kh, width * c_in, width * c_out)


def _channel_pool_matrix(width, c_out):
    """0/1 matrix P with P[j,k] = 1 iff lanes j,k hold the same channel."""
    j = jnp.arange(width * c_out)
    return (j[:, None] % c_out == j[None, :] % c_out).astype(jnp.float32)


def conv_bn_relu_x2(x_nhwc, params, *, compute_dtype=jnp.bfloat16):
    """Fused [conv3x3 -> BN(train stats) -> ReLU] x2 on an NHWC input."""
    N, H, W, Cin = x_nhwc.shape
    Cout = params["w1"].shape[0]
    Lin1, Lout = W * Cin, W * Cout

    # Layout plumbing: H zero-pad once, flatten (W, C) into a lane-dense axis,
    # cast MXU operands to bf16 (accumulation stays f32 inside the kernel).
    xp = jnp.pad(x_nhwc.astype(jnp.float32), ((0, 0), (1, 1), (0, 0), (0, 0)))
    xp = xp.reshape(N, H + 2, Lin1).astype(compute_dtype)
    wb1 = _band_weights(params["w1"], W).astype(compute_dtype)
    wb2 = _band_weights(params["w2"], W).astype(compute_dtype)
    # Conv biases intentionally not passed: train-mode BN cancels them exactly.
    g1 = jnp.tile(params["g1"].astype(jnp.float32), W).reshape(1, Lout)
    be1 = jnp.tile(params["be1"].astype(jnp.float32), W).reshape(1, Lout)
    g2 = jnp.tile(params["g2"].astype(jnp.float32), W).reshape(1, Lout)
    be2 = jnp.tile(params["be2"].astype(jnp.float32), W).reshape(1, Lout)
    pmat = _channel_pool_matrix(W, Cout)

    args = (xp, wb1, wb2, g1, be1, g2, be2, pmat)
    nbytes = sum(int(a.size) * a.dtype.itemsize for a in args) + N * H * Lout * 4
    cost = pl.CostEstimate(
        flops=2 * 3 * (N * H) * Lout * (Lin1 + Lout) + 8 * Lout * Lout,
        transcendentals=2 * Lout,
        bytes_accessed=int(nbytes),
    )

    # TODO(synk): at UNet-realistic sizes (large W*C), switch to an im2col/H-row
    # tiled grid with a halo and a cross-tile BN-statistics pass so the working
    # set fits v7x's 64 MiB VMEM and shards across its two TensorCores; at these
    # small-channel sizes the whole problem fits in VMEM as a single program.
    out2 = pl.pallas_call(
        _make_conv_bn_relu_x2_kernel(N * H * W),
        out_shape=jax.ShapeDtypeStruct((N * H, Lout), jnp.float32),
        in_specs=[pl.BlockSpec(memory_space=pltpu.MemorySpace.VMEM)] * len(args),
        out_specs=pl.BlockSpec(memory_space=pltpu.MemorySpace.VMEM),
        compiler_params=pltpu.CompilerParams(vmem_limit_bytes=48 * 1024 * 1024),
        cost_estimate=cost,
    )(*args)
    return out2.reshape(N, H, W, Cout)


# ----------------------------------------------------------------------------
# Glue: up/down-scaling, padding, concat (layout plumbing, plain JAX).
# ----------------------------------------------------------------------------
def _bilinear_up2_align_corners(x_nhwc):
    """torch.nn.Upsample(scale_factor=2, mode='bilinear', align_corners=True)."""
    N, H, W, C = x_nhwc.shape
    Ho, Wo = 2 * H, 2 * W

    def coords(n_in, n_out):
        if n_in == 1:
            z = jnp.zeros((n_out,), jnp.int32)
            return z, z, jnp.zeros((n_out,), jnp.float32)
        s = jnp.arange(n_out, dtype=jnp.float32) * (n_in - 1) / (n_out - 1)
        i0 = jnp.clip(jnp.floor(s).astype(jnp.int32), 0, n_in - 2)
        i1 = i0 + 1
        w = s - i0.astype(jnp.float32)
        return i0, i1, w

    y0, y1, wy = coords(H, Ho)
    x0, x1, wx = coords(W, Wo)
    wy = wy[None, :, None, None]
    wx = wx[None, None, :, None]
    top = x_nhwc[:, y0][:, :, x0] * (1 - wx) + x_nhwc[:, y0][:, :, x1] * wx
    bot = x_nhwc[:, y1][:, :, x0] * (1 - wx) + x_nhwc[:, y1][:, :, x1] * wx
    return top * (1 - wy) + bot * wy


def _maxpool2(x_nhwc):
    N, H, W, C = x_nhwc.shape
    x = x_nhwc[:, : (H // 2) * 2, : (W // 2) * 2, :]
    return x.reshape(N, H // 2, 2, W // 2, 2, C).max(axis=(2, 4))


def unet_block_forward(params, x1_nchw, x2_nchw=None, up=False, down=False):
    """Mirrors UNetBlock.forward. Inputs/outputs are NCHW like PyTorch."""
    assert not (up and down)
    x1 = jnp.transpose(x1_nchw, (0, 2, 3, 1))  # -> NHWC
    x = x1
    if up:
        assert x2_nchw is not None
        x2 = jnp.transpose(x2_nchw, (0, 2, 3, 1))
        x1u = _bilinear_up2_align_corners(x1)
        dh = x2.shape[1] - x1u.shape[1]
        dw = x2.shape[2] - x1u.shape[2]
        x1u = jnp.pad(x1u, ((0, 0), (dh // 2, dh - dh // 2),
                            (dw // 2, dw - dw // 2), (0, 0)))
        x = jnp.concatenate([x2, x1u], axis=-1)
    if down:
        x = _maxpool2(x1)
    y = conv_bn_relu_x2(x, params)
    return jnp.transpose(y, (0, 3, 1, 2))  # -> NCHW


# ----------------------------------------------------------------------------
# Deterministic parameter init (shapes match torch module __init__).
# ----------------------------------------------------------------------------
def init_unet_block_params(key, in_channels, out_channels):
    k1, k2, k3, k4 = jax.random.split(key, 4)
    s1 = 1.0 / math.sqrt(in_channels * 9)
    s2 = 1.0 / math.sqrt(out_channels * 9)
    return dict(
        w1=jax.random.uniform(k1, (out_channels, in_channels, 3, 3), jnp.float32, -s1, s1),
        b1=jax.random.uniform(k2, (out_channels,), jnp.float32, -s1, s1),
        g1=jnp.ones((out_channels,), jnp.float32),
        be1=jnp.zeros((out_channels,), jnp.float32),
        w2=jax.random.uniform(k3, (out_channels, out_channels, 3, 3), jnp.float32, -s2, s2),
        b2=jax.random.uniform(k4, (out_channels,), jnp.float32, -s2, s2),
        g2=jnp.ones((out_channels,), jnp.float32),
        be2=jnp.zeros((out_channels,), jnp.float32),
    )


# ----------------------------------------------------------------------------
# Pure-JAX f32 reference (includes the conv biases, which BN cancels).
# ----------------------------------------------------------------------------
def _ref_conv_bn_relu_x2(x_nhwc, params):
    def conv(x, w_oihw, b):
        w_hwio = jnp.transpose(w_oihw, (2, 3, 1, 0))
        y = jax.lax.conv_general_dilated(
            x, w_hwio, window_strides=(1, 1), padding="SAME",
            dimension_numbers=("NHWC", "HWIO", "NHWC"))
        return y + b

    def bn_relu(y, g, be):
        mean = y.mean(axis=(0, 1, 2), keepdims=True)
        var = jnp.square(y - mean).mean(axis=(0, 1, 2), keepdims=True)
        return jnp.maximum((y - mean) / jnp.sqrt(var + _BN_EPS) * g + be, 0.0)

    y = bn_relu(conv(x_nhwc, params["w1"], params["b1"]), params["g1"], params["be1"])
    y = bn_relu(conv(y, params["w2"], params["b2"]), params["g2"], params["be2"])
    return y


def _check(out_nchw, x_nhwc, params, tag):
    ref = jnp.transpose(_ref_conv_bn_relu_x2(x_nhwc, params), (0, 3, 1, 2))
    diff = jnp.abs(out_nchw - ref)
    max_err = float(jnp.max(diff))
    mean_err = float(jnp.mean(diff))
    # Kernel feeds the MXU in bf16 (per v6e/v7x guidance); reference is pure f32,
    # hence the bf16-aware tolerances.
    assert max_err < 1e-1, f"{tag}: max abs err {max_err}"
    assert mean_err < 3e-2, f"{tag}: mean abs err {mean_err}"


if __name__ == "__main__":
    key = jax.random.PRNGKey(0)
    kx1, kx2, kx3, kp1, kp2 = jax.random.split(key, 5)

    # ---- base variant: no up / no down ----
    in_c, out_c = 4, 8
    params = init_unet_block_params(kp1, in_c, out_c)
    x1 = jax.random.normal(kx1, (2, in_c, 16, 16), jnp.float32)      # NCHW
    y_base = unet_block_forward(params, x1)
    jax.block_until_ready(y_base)
    assert y_base.shape == (2, out_c, 16, 16)
    _check(y_base, jnp.transpose(x1, (0, 2, 3, 1)), params, "base")

    # ---- down variant: MaxPool2d(2) then convs ----
    y_down = unet_block_forward(params, x1, down=True)
    jax.block_until_ready(y_down)
    assert y_down.shape == (2, out_c, 8, 8)
    _check(y_down, _maxpool2(jnp.transpose(x1, (0, 2, 3, 1))), params, "down")

    # ---- up variant: bilinear upsample x1, pad, concat with x2, then convs ----
    params_up = init_unet_block_params(kp2, 8, 8)                     # in_channels = 4 + 4
    x1u = jax.random.normal(kx2, (2, 4, 8, 8), jnp.float32)
    x2u = jax.random.normal(kx3, (2, 4, 16, 16), jnp.float32)
    y_up = unet_block_forward(params_up, x1u, x2u, up=True)
    jax.block_until_ready(y_up)
    assert y_up.shape == (2, 8, 16, 16)
    x_cat = jnp.concatenate(
        [jnp.transpose(x2u, (0, 2, 3, 1)),
         _bilinear_up2_align_corners(jnp.transpose(x1u, (0, 2, 3, 1)))], axis=-1)
    _check(y_up, x_cat, params_up, "up")

    print("KERNEL_OK")
</pallas_src>

<mosaic_0001>
module attributes {stable_mosaic.version = 11 : i64} {
  func.func @kernel(%arg0: memref<2x18x64xbf16, #tpu.memory_space<vmem>>, %arg1: memref<3x64x128xbf16, #tpu.memory_space<vmem>>, %arg2: memref<3x128x128xbf16, #tpu.memory_space<vmem>>, %arg3: memref<1x128xf32, #tpu.memory_space<vmem>>, %arg4: memref<1x128xf32, #tpu.memory_space<vmem>>, %arg5: memref<1x128xf32, #tpu.memory_space<vmem>>, %arg6: memref<1x128xf32, #tpu.memory_space<vmem>>, %arg7: memref<128x128xf32, #tpu.memory_space<vmem>>, %arg8: memref<32x128xf32, #tpu.memory_space<vmem>>) attributes {dimension_semantics = [], scalar_prefetch = 0 : i64, scratch_operands = 0 : i64, tpu.core_type = #tpu.core_type<tc>} {
    %c0 = arith.constant 0 : index
    %c0_0 = arith.constant 0 : index
    %c0_1 = arith.constant 0 : index
    %0 = vector.load %arg0[%c0, %c0_0, %c0_1] : memref<2x18x64xbf16, #tpu.memory_space<vmem>>, vector<2x18x64xbf16>
    %cst = arith.constant 0.000000e+00 : f32
    %1 = vector.broadcast %cst : f32 to vector<32x128xf32>
    %2 = vector.extract_strided_slice %0 {offsets = [0, 0, 0], sizes = [2, 16, 64], strides = [1, 1, 1]} : vector<2x18x64xbf16> to vector<2x16x64xbf16>
    %3 = vector.shape_cast %2 : vector<2x16x64xbf16> to vector<32x64xbf16>
    %c0_2 = arith.constant 0 : index
    %c0_3 = arith.constant 0 : index
    %c0_4 = arith.constant 0 : index
    %4 = vector.load %arg1[%c0_2, %c0_3, %c0_4] : memref<3x64x128xbf16, #tpu.memory_space<vmem>>, vector<1x64x128xbf16>
    %5 = vector.shape_cast %4 : vector<1x64x128xbf16> to vector<64x128xbf16>
    %cst_5 = arith.constant dense<0.000000e+00> : vector<32x128xf32>
    %6 = tpu.matmul %3, %5, %cst_5 {dimension_numbers = #tpu.dot_dimension_numbers<[1], [0], [0], [1], [0, 0, 1, 1], [], []>} : vector<32x64xbf16>, vector<64x128xbf16>, vector<32x128xf32> -> vector<32x128xf32>
    %7 = arith.addf %1, %6 : vector<32x128xf32>
    %8 = vector.extract_strided_slice %0 {offsets = [0, 1, 0], sizes = [2, 16, 64], strides = [1, 1, 1]} : vector<2x18x64xbf16> to vector<2x16x64xbf16>
    %9 = vector.shape_cast %8 : vector<2x16x64xbf16> to vector<32x64xbf16>
    %c1 = arith.constant 1 : index
    %c0_6 = arith.constant 0 : index
    %c0_7 = arith.constant 0 : index
    %10 = vector.load %arg1[%c1, %c0_6, %c0_7] : memref<3x64x128xbf16, #tpu.memory_space<vmem>>, vector<1x64x128xbf16>
    %11 = vector.shape_cast %10 : vector<1x64x128xbf16> to vector<64x128xbf16>
    %cst_8 = arith.constant dense<0.000000e+00> : vector<32x128xf32>
    %12 = tpu.matmul %9, %11, %cst_8 {dimension_numbers = #tpu.dot_dimension_numbers<[1], [0], [0], [1], [0, 0, 1, 1], [], []>} : vector<32x64xbf16>, vector<64x128xbf16>, vector<32x128xf32> -> vector<32x128xf32>
    %13 = arith.addf %7, %12 : vector<32x128xf32>
    %14 = vector.extract_strided_slice %0 {offsets = [0, 2, 0], sizes = [2, 16, 64], strides = [1, 1, 1]} : vector<2x18x64xbf16> to vector<2x16x64xbf16>
    %15 = vector.shape_cast %14 : vector<2x16x64xbf16> to vector<32x64xbf16>
    %c2 = arith.constant 2 : index
    %c0_9 = arith.constant 0 : index
    %c0_10 = arith.constant 0 : index
    %16 = vector.load %arg1[%c2, %c0_9, %c0_10] : memref<3x64x128xbf16, #tpu.memory_space<vmem>>, vector<1x64x128xbf16>
    %17 = vector.shape_cast %16 : vector<1x64x128xbf16> to vector<64x128xbf16>
    %cst_11 = arith.constant dense<0.000000e+00> : vector<32x128xf32>
    %18 = tpu.matmul %15, %17, %cst_11 {dimension_numbers = #tpu.dot_dimension_numbers<[1], [0], [0], [1], [0, 0, 1, 1], [], []>} : vector<32x64xbf16>, vector<64x128xbf16>, vector<32x128xf32> -> vector<32x128xf32>
    %19 = arith.addf %13, %18 : vector<32x128xf32>
    %cst_12 = arith.constant dense<0.000000e+00> : vector<128xf32>
    %20 = vector.multi_reduction <add>, %19, %cst_12 [0] : vector<32x128xf32> to vector<128xf32>
    %21 = vector.shape_cast %20 : vector<128xf32> to vector<1x128xf32>
    %22 = arith.mulf %19, %19 : vector<32x128xf32>
    %cst_13 = arith.constant dense<0.000000e+00> : vector<128xf32>
    %23 = vector.multi_reduction <add>, %22, %cst_13 [0] : vector<32x128xf32> to vector<128xf32>
    %24 = vector.shape_cast %23 : vector<128xf32> to vector<1x128xf32>
    %c0_14 = arith.constant 0 : index
    %c0_15 = arith.constant 0 : index
    %25 = vector.load %arg7[%c0_14, %c0_15] : memref<128x128xf32, #tpu.memory_space<vmem>>, vector<128x128xf32>
    %cst_16 = arith.constant dense<0.000000e+00> : vector<1x128xf32>
    %26 = tpu.matmul %21, %25, %cst_16 {dimension_numbers = #tpu.dot_dimension_numbers<[1], [0], [0], [1], [0, 0, 1, 1], [], []>} : vector<1x128xf32>, vector<128x128xf32>, vector<1x128xf32> -> vector<1x128xf32>
    %cst_17 = arith.constant 0.001953125 : f32
    %27 = vector.broadcast %cst_17 : f32 to vector<1x128xf32>
    %28 = arith.mulf %26, %27 : vector<1x128xf32>
    %c0_18 = arith.constant 0 : index
    %c0_19 = arith.constant 0 : index
    %29 = vector.load %arg7[%c0_18, %c0_19] : memref<128x128xf32, #tpu.memory_space<vmem>>, vector<128x128xf32>
    %cst_20 = arith.constant dense<0.000000e+00> : vector<1x128xf32>
    %30 = tpu.matmul %24, %29, %cst_20 {dimension_numbers = #tpu.dot_dimension_numbers<[1], [0], [0], [1], [0, 0, 1, 1], [], []>} : vector<1x128xf32>, vector<128x128xf32>, vector<1x128xf32> -> vector<1x128xf32>
    %cst_21 = arith.constant 0.001953125 : f32
    %31 = vector.broadcast %cst_21 : f32 to vector<1x128xf32>
    %32 = arith.mulf %30, %31 : vector<1x128xf32>
    %33 = arith.mulf %28, %28 : vector<1x128xf32>
    %34 = arith.subf %32, %33 : vector<1x128xf32>
    %cst_22 = arith.constant 0.000000e+00 : f32
    %35 = vector.broadcast %cst_22 : f32 to vector<1x128xf32>
    %36 = arith.maximumf %34, %35 : vector<1x128xf32>
    %37 = vector.broadcast %28 : vector<1x128xf32> to vector<32x128xf32>
    %38 = arith.subf %19, %37 : vector<32x128xf32>
    %cst_23 = arith.constant 9.99999974E-6 : f32
    %39 = vector.broadcast %cst_23 : f32 to vector<1x128xf32>
    %40 = arith.addf %36, %39 : vector<1x128xf32>
    %41 = math.rsqrt %40 : vector<1x128xf32>
    %42 = vector.broadcast %41 : vector<1x128xf32> to vector<32x128xf32>
    %43 = arith.mulf %38, %42 : vector<32x128xf32>
    %c0_24 = arith.constant 0 : index
    %c0_25 = arith.constant 0 : index
    %44 = vector.load %arg3[%c0_24, %c0_25] : memref<1x128xf32, #tpu.memory_space<vmem>>, vector<1x128xf32>
    %45 = vector.broadcast %44 : vector<1x128xf32> to vector<32x128xf32>
    %46 = arith.mulf %43, %45 : vector<32x128xf32>
    %c0_26 = arith.constant 0 : index
    %c0_27 = arith.constant 0 : index
    %47 = vector.load %arg4[%c0_26, %c0_27] : memref<1x128xf32, #tpu.memory_space<vmem>>, vector<1x128xf32>
    %48 = vector.broadcast %47 : vector<1x128xf32> to vector<32x128xf32>
    %49 = arith.addf %46, %48 : vector<32x128xf32>
    %cst_28 = arith.constant 0.000000e+00 : f32
    %50 = vector.broadcast %cst_28 : f32 to vector<32x128xf32>
    %51 = arith.maximumf %49, %50 : vector<32x128xf32>
    %52 = vector.shape_cast %51 : vector<32x128xf32> to vector<2x16x128xf32>
    %53 = arith.truncf %52 : vector<2x16x128xf32> to vector<2x16x128xbf16>
    %cst_29 = arith.constant 0.000000e+00 : bf16
    %54 = vector.broadcast %cst_29 : bf16 to vector<2x1x128xbf16>
    %55 = tpu.concatenate %54, %53, %54 in 1 : vector<2x1x128xbf16>, vector<2x16x128xbf16>, vector<2x1x128xbf16> -> vector<2x18x128xbf16>
    %cst_30 = arith.constant 0.000000e+00 : f32
    %56 = vector.broadcast %cst_30 : f32 to vector<32x128xf32>
    %57 = vector.extract_strided_slice %55 {offsets = [0, 0, 0], sizes = [2, 16, 128], strides = [1, 1, 1]} : vector<2x18x128xbf16> to vector<2x16x128xbf16>
    %58 = vector.shape_cast %57 : vector<2x16x128xbf16> to vector<32x128xbf16>
    %c0_31 = arith.constant 0 : index
    %c0_32 = arith.constant 0 : index
    %c0_33 = arith.constant 0 : index
    %59 = vector.load %arg2[%c0_31, %c0_32, %c0_33] : memref<3x128x128xbf16, #tpu.memory_space<vmem>>, vector<1x128x128xbf16>
    %60 = vector.shape_cast %59 : vector<1x128x128xbf16> to vector<128x128xbf16>
    %cst_34 = arith.constant dense<0.000000e+00> : vector<32x128xf32>
    %61 = tpu.matmul %58, %60, %cst_34 {dimension_numbers = #tpu.dot_dimension_numbers<[1], [0], [0], [1], [0, 0, 1, 1], [], []>} : vector<32x128xbf16>, vector<128x128xbf16>, vector<32x128xf32> -> vector<32x128xf32>
    %62 = arith.addf %56, %61 : vector<32x128xf32>
    %63 = vector.extract_strided_slice %55 {offsets = [0, 1, 0], sizes = [2, 16, 128], strides = [1, 1, 1]} : vector<2x18x128xbf16> to vector<2x16x128xbf16>
    %64 = vector.shape_cast %63 : vector<2x16x128xbf16> to vector<32x128xbf16>
    %c1_35 = arith.constant 1 : index
    %c0_36 = arith.constant 0 : index
    %c0_37 = arith.constant 0 : index
    %65 = vector.load %arg2[%c1_35, %c0_36, %c0_37] : memref<3x128x128xbf16, #tpu.memory_space<vmem>>, vector<1x128x128xbf16>
    %66 = vector.shape_cast %65 : vector<1x128x128xbf16> to vector<128x128xbf16>
    %cst_38 = arith.constant dense<0.000000e+00> : vector<32x128xf32>
    %67 = tpu.matmul %64, %66, %cst_38 {dimension_numbers = #tpu.dot_dimension_numbers<[1], [0], [0], [1], [0, 0, 1, 1], [], []>} : vector<32x128xbf16>, vector<128x128xbf16>, vector<32x128xf32> -> vector<32x128xf32>
    %68 = arith.addf %62, %67 : vector<32x128xf32>
    %69 = vector.extract_strided_slice %55 {offsets = [0, 2, 0], sizes = [2, 16, 128], strides = [1, 1, 1]} : vector<2x18x128xbf16> to vector<2x16x128xbf16>
    %70 = vector.shape_cast %69 : vector<2x16x128xbf16> to vector<32x128xbf16>
    %c2_39 = arith.constant 2 : index
    %c0_40 = arith.constant 0 : index
    %c0_41 = arith.constant 0 : index
    %71 = vector.load %arg2[%c2_39, %c0_40, %c0_41] : memref<3x128x128xbf16, #tpu.memory_space<vmem>>, vector<1x128x128xbf16>
    %72 = vector.shape_cast %71 : vector<1x128x128xbf16> to vector<128x128xbf16>
    %cst_42 = arith.constant dense<0.000000e+00> : vector<32x128xf32>
    %73 = tpu.matmul %70, %72, %cst_42 {dimension_numbers = #tpu.dot_dimension_numbers<[1], [0], [0], [1], [0, 0, 1, 1], [], []>} : vector<32x128xbf16>, vector<128x128xbf16>, vector<32x128xf32> -> vector<32x128xf32>
    %74 = arith.addf %68, %73 : vector<32x128xf32>
    %cst_43 = arith.constant dense<0.000000e+00> : vector<128xf32>
    %75 = vector.multi_reduction <add>, %74, %cst_43 [0] : vector<32x128xf32> to vector<128xf32>
    %76 = vector.shape_cast %75 : vector<128xf32> to vector<1x128xf32>
    %77 = arith.mulf %74, %74 : vector<32x128xf32>
    %cst_44 = arith.constant dense<0.000000e+00> : vector<128xf32>
    %78 = vector.multi_reduction <add>, %77, %cst_44 [0] : vector<32x128xf32> to vector<128xf32>
    %79 = vector.shape_cast %78 : vector<128xf32> to vector<1x128xf32>
    %c0_45 = arith.constant 0 : index
    %c0_46 = arith.constant 0 : index
    %80 = vector.load %arg7[%c0_45, %c0_46] : memref<128x128xf32, #tpu.memory_space<vmem>>, vector<128x128xf32>
    %cst_47 = arith.constant dense<0.000000e+00> : vector<1x128xf32>
    %81 = tpu.matmul %76, %80, %cst_47 {dimension_numbers = #tpu.dot_dimension_numbers<[1], [0], [0], [1], [0, 0, 1, 1], [], []>} : vector<1x128xf32>, vector<128x128xf32>, vector<1x128xf32> -> vector<1x128xf32>
    %cst_48 = arith.constant 0.001953125 : f32
    %82 = vector.broadcast %cst_48 : f32 to vector<1x128xf32>
    %83 = arith.mulf %81, %82 : vector<1x128xf32>
    %c0_49 = arith.constant 0 : index
    %c0_50 = arith.constant 0 : index
    %84 = vector.load %arg7[%c0_49, %c0_50] : memref<128x128xf32, #tpu.memory_space<vmem>>, vector<128x128xf32>
    %cst_51 = arith.constant dense<0.000000e+00> : vector<1x128xf32>
    %85 = tpu.matmul %79, %84, %cst_51 {dimension_numbers = #tpu.dot_dimension_numbers<[1], [0], [0], [1], [0, 0, 1, 1], [], []>} : vector<1x128xf32>, vector<128x128xf32>, vector<1x128xf32> -> vector<1x128xf32>
    %cst_52 = arith.constant 0.001953125 : f32
    %86 = vector.broadcast %cst_52 : f32 to vector<1x128xf32>
    %87 = arith.mulf %85, %86 : vector<1x128xf32>
    %88 = arith.mulf %83, %83 : vector<1x128xf32>
    %89 = arith.subf %87, %88 : vector<1x128xf32>
    %cst_53 = arith.constant 0.000000e+00 : f32
    %90 = vector.broadcast %cst_53 : f32 to vector<1x128xf32>
    %91 = arith.maximumf %89, %90 : vector<1x128xf32>
    %92 = vector.broadcast %83 : vector<1x128xf32> to vector<32x128xf32>
    %93 = arith.subf %74, %92 : vector<32x128xf32>
    %cst_54 = arith.constant 9.99999974E-6 : f32
    %94 = vector.broadcast %cst_54 : f32 to vector<1x128xf32>
    %95 = arith.addf %91, %94 : vector<1x128xf32>
    %96 = math.rsqrt %95 : vector<1x128xf32>
    %97 = vector.broadcast %96 : vector<1x128xf32> to vector<32x128xf32>
    %98 = arith.mulf %93, %97 : vector<32x128xf32>
    %c0_55 = arith.constant 0 : index
    %c0_56 = arith.constant 0 : index
    %99 = vector.load %arg5[%c0_55, %c0_56] : memref<1x128xf32, #tpu.memory_space<vmem>>, vector<1x128xf32>
    %100 = vector.broadcast %99 : vector<1x128xf32> to vector<32x128xf32>
    %101 = arith.mulf %98, %100 : vector<32x128xf32>
    %c0_57 = arith.constant 0 : index
    %c0_58 = arith.constant 0 : index
    %102 = vector.load %arg6[%c0_57, %c0_58] : memref<1x128xf32, #tpu.memory_space<vmem>>, vector<1x128xf32>
    %103 = vector.broadcast %102 : vector<1x128xf32> to vector<32x128xf32>
    %104 = arith.addf %101, %103 : vector<32x128xf32>
    %cst_59 = arith.constant 0.000000e+00 : f32
    %105 = vector.broadcast %cst_59 : f32 to vector<32x128xf32>
    %106 = arith.maximumf %104, %105 : vector<32x128xf32>
    %c0_60 = arith.constant 0 : index
    %c0_61 = arith.constant 0 : index
    %107 = vector.load %arg8[%c0_60, %c0_61] : memref<32x128xf32, #tpu.memory_space<vmem>>, vector<32x128xf32>
    tpu.vector_store %arg8[%c0_60, %c0_61], %106 {strides = array<i32>} : memref<32x128xf32, #tpu.memory_space<vmem>>, vector<32x128xf32>,
    return
  }
}

</mosaic_0001>

<llo_original>
// kernel: tpu_custom_call.1
$region0: #{tpu_custom_call.1}
  #allocation0 [shape = 'u32[]', space=smem, size = 0x4, offset = 0x4, fixed_abs, tag = 'smem constant byte address 0x4 - core index']
  #allocation1 [shape = 'u32[144,128]{1,0:T(1,128)}', space=vmem, size = 0x12000, scoped, tag = 'internal scratch']
  %s0 = inlined_call_operand.vmem [shape: bf16[2,18,64], index: 0, kind: input, shape index: {}]
  %s1 = inlined_call_operand.hbm [shape: bf16[3,64,128], index: 1, kind: input, shape index: {}]
  %s2 = inlined_call_operand.hbm [shape: bf16[3,128,128], index: 2, kind: input, shape index: {}]
  %s3 = inlined_call_operand.vmem [shape: f32[1,128], index: 3, kind: input, shape index: {}]
  %s4 = inlined_call_operand.vmem [shape: f32[1,128], index: 4, kind: input, shape index: {}]
  %s5 = inlined_call_operand.vmem [shape: f32[1,128], index: 5, kind: input, shape index: {}]
  %s6 = inlined_call_operand.vmem [shape: f32[1,128], index: 6, kind: input, shape index: {}]
  %s7 = inlined_call_operand.hbm [shape: f32[128,128], index: 7, kind: input, shape index: {}]
  %s8 = inlined_call_operand.hbm [shape: f32[32,128], index: 8, kind: output, shape index: {}]
  %s9 = sld [smem:[#allocation0]]
  $region54: #{tpu_custom_call.1} parent=0
    _
  %s11 = ssub.s32 1, %s9
  %s12 = scalar_select 0, %s11, %s9
  $region1: #{tpu_custom_call.1} parent=0
    #allocation2 [shape = 'u8[49152]{0}', space=vmem, size = 0xc000, scoped, tag = 'input window, operand 1, single buffered']
    #allocation3 [shape = 's32[1]{0}', space=sflag, size = 0x4, scoped, tag = 'scoped memory for tpu_custom_call.1']
    #allocation4 [shape = 's32[1]{0}', space=sflag, size = 0x4, scoped, tag = 'scoped memory for tpu_custom_call.1']
    #allocation5 [shape = 'u8[98304]{0}', space=vmem, size = 0x18000, scoped, tag = 'input window, operand 2, single buffered']
    #allocation6 [shape = 's32[1]{0}', space=sflag, size = 0x4, scoped, tag = 'scoped memory for tpu_custom_call.1']
    #allocation7 [shape = 'u8[65536]{0}', space=vmem, size = 0x10000, scoped, tag = 'input window, operand 7, single buffered']
    #allocation8 [shape = 'u8[16384]{0}', space=vmem, size = 0x4000, scoped, tag = 'output window, operand 0, single buffered']
    %13 = vsyncpa [#allocation3], 0
    %14 = vsyncpa [#allocation6], 0
    %15 = vsyncpa [#allocation4], 0
    // Predicated region
    $region2: #{tpu_custom_call.1} parent=1 // pred_check
      _
    $region3: #{tpu_custom_call.1} parent=1 // pred_check_branch
      %17 = sbr.rel (0) target = $region5
    $region4: #{tpu_custom_call.1} parent=1 // pred_region
      _
    $region5: #{tpu_custom_call.1} parent=1 // pred_fallthru
      _
    // Predicated region
    $region6: #{tpu_custom_call.1} parent=1 // pred_check
      _
    $region7: #{tpu_custom_call.1} parent=1 // pred_check_branch
      %19 = sbr.rel (0) target = $region9
    $region8: #{tpu_custom_call.1} parent=1 // pred_region
      %s21 = ssub.s32 1536, 1536
      %22 = vsyncadd [#allocation3], %s21
      %s23 = sshll.u32 [#allocation2], 4
      %s24 = int_to_ptr.vmem [resolvable:$true] %s23
      %29 = dma.hbm_to_vmem [thread:$0]  %s1, 1536, %s24, [#allocation3], 64, 64, 4
    $region9: #{tpu_custom_call.1} parent=1 // pred_fallthru
      _
    // Predicated region
    $region10: #{tpu_custom_call.1} parent=1 // pred_check
      _
    $region11: #{tpu_custom_call.1} parent=1 // pred_check_branch
      %31 = sbr.rel (0) target = $region13
    $region12: #{tpu_custom_call.1} parent=1 // pred_region
      %s33 = ssub.s32 3072, 3072
      %34 = vsyncadd [#allocation6], %s33
      %s35 = sshll.u32 [#allocation5], 4
      %s36 = int_to_ptr.vmem [resolvable:$true] %s35
      %41 = dma.hbm_to_vmem [thread:$0]  %s2, 3072, %s36, [#allocation6], 64, 64, 4
    $region13: #{tpu_custom_call.1} parent=1 // pred_fallthru
      _
    // Predicated region
    $region14: #{tpu_custom_call.1} parent=1 // pred_check
      _
    $region15: #{tpu_custom_call.1} parent=1 // pred_check_branch
      %43 = sbr.rel (0) target = $region17
    $region16: #{tpu_custom_call.1} parent=1 // pred_region
      _
    $region17: #{tpu_custom_call.1} parent=1 // pred_fallthru
      _
    // Predicated region
    $region18: #{tpu_custom_call.1} parent=1 // pred_check
      _
    $region19: #{tpu_custom_call.1} parent=1 // pred_check_branch
      %45 = sbr.rel (0) target = $region21
    $region20: #{tpu_custom_call.1} parent=1 // pred_region
      _
    $region21: #{tpu_custom_call.1} parent=1 // pred_fallthru
      _
    // Predicated region
    $region22: #{tpu_custom_call.1} parent=1 // pred_check
      _
    $region23: #{tpu_custom_call.1} parent=1 // pred_check_branch
      %47 = sbr.rel (0) target = $region25
    $region24: #{tpu_custom_call.1} parent=1 // pred_region
      _
    $region25: #{tpu_custom_call.1} parent=1 // pred_fallthru
      _
    // Predicated region
    $region26: #{tpu_custom_call.1} parent=1 // pred_check
      _
    $region27: #{tpu_custom_call.1} parent=1 // pred_check_branch
      %49 = sbr.rel (0) target = $region29
    $region28: #{tpu_custom_call.1} parent=1 // pred_region
      _
    $region29: #{tpu_custom_call.1} parent=1 // pred_fallthru
      _
    // Predicated region
    $region30: #{tpu_custom_call.1} parent=1 // pred_check
      _
    $region31: #{tpu_custom_call.1} parent=1 // pred_check_branch
      %51 = sbr.rel (0) target = $region33
    $region32: #{tpu_custom_call.1} parent=1 // pred_region
      %s53 = ssub.s32 2048, 2048
      %54 = vsyncadd [#allocation6], %s53
      %s55 = sshll.u32 [#allocation7], 4
      %s56 = int_to_ptr.vmem [resolvable:$true] %s55
      %61 = dma.hbm_to_vmem [thread:$0]  %s7, 2048, %s56, [#allocation6], 128, 128, 8
    $region33: #{tpu_custom_call.1} parent=1 // pred_fallthru
      _
    // Predicated region
    $region34: #{tpu_custom_call.1} parent=1 // pred_check
      _
    $region35: #{tpu_custom_call.1} parent=1 // pred_check_branch
      %63 = sbr.rel (0) target = $region37
    $region36: #{tpu_custom_call.1} parent=1 // pred_region
      %64 = dma.done [#allocation3], 1536
    $region37: #{tpu_custom_call.1} parent=1 // pred_fallthru
      _
    // Predicated region
    $region38: #{tpu_custom_call.1} parent=1 // pred_check
      _
    $region39: #{tpu_custom_call.1} parent=1 // pred_check_branch
      %66 = sbr.rel (0) target = $region41
    $region40: #{tpu_custom_call.1} parent=1 // pred_region
      %67 = dma.done [#allocation6], 3072
    $region41: #{tpu_custom_call.1} parent=1 // pred_fallthru
      _
    // Predicated region
    $region42: #{tpu_custom_call.1} parent=1 // pred_check
      _
    $region43: #{tpu_custom_call.1} parent=1 // pred_check_branch
      %69 = sbr.rel (0) target = $region45
    $region44: #{tpu_custom_call.1} parent=1 // pred_region
      %70 = dma.done [#allocation6], 2048
    $region45: #{tpu_custom_call.1} parent=1 // pred_fallthru
      _
    %v72 = vld [vmem:[%s0] sm:$0xf]
    %v73 = vld [vmem:[%s0 + $0x4] sm:$0xf]
    %v74 = vld [vmem:[%s0 + $0x8] sm:$0x1]
    %v75 = vld [vmem:[%s0 + $0xc] sm:$0xf]
    %v76 = vld [vmem:[%s0 + $0x10] sm:$0xf]
    %v77 = vld [vmem:[%s0 + $0x14] sm:$0x1]
    %v78 = vld [vmem:[#allocation2] sm:$0xf]
    %v79 = vld [vmem:[#allocation2 + $0x4] sm:$0xf]
    %v80 = vld [vmem:[#allocation2 + $0x8] sm:$0xf]
    %v81 = vld [vmem:[#allocation2 + $0xc] sm:$0xf]
    %v82 = vld [vmem:[#allocation2 + $0x10] sm:$0xf]
    %v83 = vld [vmem:[#allocation2 + $0x14] sm:$0xf]
    %v84 = vld [vmem:[#allocation2 + $0x18] sm:$0xf]
    %v85 = vld [vmem:[#allocation2 + $0x1c] sm:$0xf]
    %vm86 = vsmask.f32 3328
    %vm87 = vsmask.f32 7440
    %vm88 = vmor %vm86, %vm87
    %v90 = vshrl.u32 %v72, 16
    %v92 = vrot.slane %v90, 4
    %v93 = vshll.u32 %v72, 16
    %v95 = vrot.slane %v93, 5
    %v96 = vor.u32 %v92, %v95
    %v97 = vrot.slane %v96, 4
    %v99 = vshll.u32 %v73, 16
    %v101 = vrot.slane %v99, 5
    %v102 = vsel %vm88, %v97, %v101
    %v103 = vshrl.u32 %v73, 16
    %v105 = vrot.slane %v103, 4
    %v106 = vor.u32 %v105, %v101
    %v107 = vrot.slane %v106, 4
    %v109 = vshll.u32 %v74, 16
    %v111 = vrot.slane %v109, 5
    %v112 = vsel %vm88, %v107, %v111
    %v114 = vshrl.u32 %v75, 16
    %v116 = vrot.slane %v114, 4
    %v117 = vshll.u32 %v75, 16
    %v119 = vrot.slane %v117, 5
    %v120 = vor.u32 %v116, %v119
    %v121 = vrot.slane %v120, 4
    %v123 = vshll.u32 %v76, 16
    %v125 = vrot.slane %v123, 5
    %v126 = vsel %vm88, %v121, %v125
    %v127 = vshrl.u32 %v76, 16
    %v129 = vrot.slane %v127, 4
    %v130 = vor.u32 %v129, %v125
    %v131 = vrot.slane %v130, 4
    %v133 = vshll.u32 %v77, 16
    %v135 = vrot.slane %v133, 5
    %v136 = vsel %vm88, %v131, %v135
    %s137 = scalar_lea.vmem [#allocation2], 32
    %v138 = vld [vmem:[%s137] sm:$0xf]
    %v139 = vld [vmem:[%s137 + $0x4] sm:$0xf]
    %v140 = vld [vmem:[%s137 + $0x8] sm:$0xf]
    %v141 = vld [vmem:[%s137 + $0xc] sm:$0xf]
    %v142 = vld [vmem:[%s137 + $0x10] sm:$0xf]
    %v143 = vld [vmem:[%s137 + $0x14] sm:$0xf]
    %v144 = vld [vmem:[%s137 + $0x18] sm:$0xf]
    %v145 = vld [vmem:[%s137 + $0x1c] sm:$0xf]
    %v146 = vunpack.c.l.b16 %v102
    %v147 = vunpack.c.l.b16 %v112
    %v148 = vunpack.c.l.b16 %v126
    %v149 = vunpack.c.l.b16 %v136
    %v150 = vpack.c.b16 %v147, %v146
    %v151 = vpack.c.b16 %v149, %v148
    %v160 = vunpack.c.l.b16 %v138
    %v161 = vunpack.c.l.b16 %v139
    %v162 = vunpack.c.l.b16 %v140
    %v163 = vunpack.c.l.b16 %v141
    %v164 = vunpack.c.l.b16 %v142
    %v165 = vunpack.c.l.b16 %v143
    %v166 = vunpack.c.l.b16 %v144
    %v167 = vunpack.c.l.b16 %v145
    %v168 = vpack.c.b16 %v161, %v160
    %v169 = vpack.c.b16 %v163, %v162
    %v170 = vpack.c.b16 %v165, %v164
    %v171 = vpack.c.b16 %v167, %v166
    %vm176 = vcmask 523264
    %v178 = vsel %vm176, %v150, 0
    %v181 = vsel %vm176, %v151, 0
    %183 = vmatprep.subr.bf16.mxu0 0
    %184 = vmatpush1.bf16.msra.mxu0 0
    %185 = vmatprep.subr.bf16.mxu0 0
    %186 = vmatpush1.bf16.msra.mxu0 0
    %187 = vmatprep.subr.bf16.mxu0 0
    %188 = vmatpush1.bf16.msra.mxu0 0
    %189 = vmatprep.subr.bf16.mxu0 0
    %190 = vmatpush1.bf16.msra.mxu0 0
    %191 = vmatprep.subr.bf16.mxu0 0
    %192 = vmatpush1.bf16.msra.mxu0 %v171
    %193 = vmatprep.subr.bf16.mxu0 0
    %194 = vmatpush1.bf16.msra.mxu0 %v170
    %195 = vmatprep.subr.bf16.mxu0 0
    %196 = vmatpush1.bf16.msra.mxu0 %v169
    %197 = vmatprep.subr.bf16.mxu0 0
    %198 = vmatpush1.bf16.msra.mxu0 %v168
    %199 = vmatprep.subr.bf16.mxu0 0
    %200 = vmatpush2.bf16.msra.mxu0 0
    %201 = vmatprep.subr.bf16.mxu0 0
    %202 = vmatpush2.bf16.msra.mxu0 0
    %203 = vmatprep.subr.bf16.mxu0 0
    %204 = vmatpush2.bf16.msra.mxu0 0
    %205 = vmatprep.subr.bf16.mxu0 0
    %206 = vmatpush2.bf16.msra.mxu0 0
    %207 = vmatprep.subr.bf16.mxu0 0
    %208 = vmatpush2.bf16.msra.mxu0 0
    %209 = vmatprep.subr.bf16.mxu0 0
    %210 = vmatpush2.bf16.msra.mxu0 0
    %211 = vmatprep.subr.bf16.mxu0 0
    %212 = vmatpush2.bf16.msra.mxu0 0
    %213 = vmatprep.subr.bf16.mxu0 0
    %214 = vmatpush2.bf16.msra.mxu0 0
    %215 = vmatprep.mubr.bf16.mxu0 0
    %216 = vmatmul.mubr.bf16.gmra.mxu0 %v178
    %v217 = vpop.f32.mrf.mxu0
    %v218 = vadd.f32 0.0, %v217
    %v219 = vpop.f32.mrf.mxu0
    %v220 = vpop.f32.mrf.mxu0
    %v221 = vadd.f32 0.0, %v220
    %v222 = vpop.f32.mrf.mxu0
    %223 = vmatprep.mubr.bf16.mxu0 0
    %224 = vmatmul.mubr.bf16.gmra.mxu0 %v181
    %v225 = vpop.f32.mrf.mxu0
    %v226 = vadd.f32 0.0, %v225
    %v227 = vpop.f32.mrf.mxu0
    %v228 = vpop.f32.mrf.mxu0
    %v229 = vadd.f32 0.0, %v228
    %v230 = vpop.f32.mrf.mxu0
    %231 = vdwg.mxu0
    %v236 = vunpack.c.l.b16 %v72
    %v237 = vunpack.c.l.b16 %v73
    %v238 = vunpack.c.l.b16 %v75
    %v239 = vunpack.c.l.b16 %v76
    %v240 = vpack.c.b16 %v237, %v236
    %v241 = vpack.c.b16 %v239, %v238
    %v250 = vunpack.c.l.b16 %v78
    %v251 = vunpack.c.l.b16 %v79
    %v252 = vunpack.c.l.b16 %v80
    %v253 = vunpack.c.l.b16 %v81
    %v254 = vunpack.c.l.b16 %v82
    %v255 = vunpack.c.l.b16 %v83
    %v256 = vunpack.c.l.b16 %v84
    %v257 = vunpack.c.l.b16 %v85
    %v258 = vpack.c.b16 %v251, %v250
    %v259 = vpack.c.b16 %v253, %v252
    %v260 = vpack.c.b16 %v255, %v254
    %v261 = vpack.c.b16 %v257, %v256
    %v267 = vsel %vm176, %v240, 0
    %v270 = vsel %vm176, %v241, 0
    %272 = vmatprep.subr.bf16.mxu0 0
    %273 = vmatpush1.bf16.msra.mxu0 0
    %274 = vmatprep.subr.bf16.mxu0 0
    %275 = vmatpush1.bf16.msra.mxu0 0
    %276 = vmatprep.subr.bf16.mxu0 0
    %277 = vmatpush1.bf16.msra.mxu0 0
    %278 = vmatprep.subr.bf16.mxu0 0
    %279 = vmatpush1.bf16.msra.mxu0 0
    %280 = vmatprep.subr.bf16.mxu0 0
    %281 = vmatpush1.bf16.msra.mxu0 %v261
    %282 = vmatprep.subr.bf16.mxu0 0
    %283 = vmatpush1.bf16.msra.mxu0 %v260
    %284 = vmatprep.subr.bf16.mxu0 0
    %285 = vmatpush1.bf16.msra.mxu0 %v259
    %286 = vmatprep.subr.bf16.mxu0 0
    %287 = vmatpush1.bf16.msra.mxu0 %v258
    %288 = vmatprep.subr.bf16.mxu0 0
    %289 = vmatpush2.bf16.msra.mxu0 0
    %290 = vmatprep.subr.bf16.mxu0 0
    %291 = vmatpush2.bf16.msra.mxu0 0
    %292 = vmatprep.subr.bf16.mxu0 0
    %293 = vmatpush2.bf16.msra.mxu0 0
    %294 = vmatprep.subr.bf16.mxu0 0
    %295 = vmatpush2.bf16.msra.mxu0 0
    %296 = vmatprep.subr.bf16.mxu0 0
    %297 = vmatpush2.bf16.msra.mxu0 0
    %298 = vmatprep.subr.bf16.mxu0 0
    %299 = vmatpush2.bf16.msra.mxu0 0
    %300 = vmatprep.subr.bf16.mxu0 0
    %301 = vmatpush2.bf16.msra.mxu0 0
    %302 = vmatprep.subr.bf16.mxu0 0
    %303 = vmatpush2.bf16.msra.mxu0 0
    %304 = vmatprep.mubr.bf16.mxu0 0
    %305 = vmatmul.mubr.bf16.gmra.mxu0 %v267
    %v306 = vpop.f32.mrf.mxu0
    %v307 = vadd.f32 %v218, %v306
    %v308 = vpop.f32.mrf.mxu0
    %v309 = vpop.f32.mrf.mxu0
    %v310 = vadd.f32 %v221, %v309
    %v311 = vpop.f32.mrf.mxu0
    %312 = vmatprep.mubr.bf16.mxu0 0
    %313 = vmatmul.mubr.bf16.gmra.mxu0 %v270
    %v314 = vpop.f32.mrf.mxu0
    %v315 = vadd.f32 %v226, %v314
    %v316 = vpop.f32.mrf.mxu0
    %v317 = vpop.f32.mrf.mxu0
    %v318 = vadd.f32 %v229, %v317
    %v319 = vpop.f32.mrf.mxu0
    %320 = vdwg.mxu0
    %vm323 = vcmask 1042432
    %vm324 = vcmask 1046532
    %vm325 = vmor %vm323, %vm324
    %v326 = vrot.slane %v72, 5
    %v327 = vrot.slane %v326, 4
    %v328 = vrot.slane %v73, 5
    %v329 = vsel %vm325, %v327, %v328
    %v330 = vrot.slane %v328, 4
    %v331 = vrot.slane %v74, 5
    %v332 = vsel %vm325, %v330, %v331
    %v333 = vrot.slane %v75, 5
    %v334 = vrot.slane %v333, 4
    %v335 = vrot.slane %v76, 5
    %v336 = vsel %vm325, %v334, %v335
    %v337 = vrot.slane %v335, 4
    %v338 = vrot.slane %v77, 5
    %v339 = vsel %vm325, %v337, %v338
    %s340 = scalar_lea.vmem [#allocation2], 64
    %v341 = vld [vmem:[%s340] sm:$0xf]
    %v342 = vld [vmem:[%s340 + $0x4] sm:$0xf]
    %v343 = vld [vmem:[%s340 + $0x8] sm:$0xf]
    %v344 = vld [vmem:[%s340 + $0xc] sm:$0xf]
    %v345 = vld [vmem:[%s340 + $0x10] sm:$0xf]
    %v346 = vld [vmem:[%s340 + $0x14] sm:$0xf]
    %v347 = vld [vmem:[%s340 + $0x18] sm:$0xf]
    %v348 = vld [vmem:[%s340 + $0x1c] sm:$0xf]
    %v349 = vunpack.c.l.b16 %v329
    %v350 = vunpack.c.l.b16 %v332
    %v351 = vunpack.c.l.b16 %v336
    %v352 = vunpack.c.l.b16 %v339
    %v353 = vpack.c.b16 %v350, %v349
    %v354 = vpack.c.b16 %v352, %v351
    %v363 = vunpack.c.l.b16 %v341
    %v364 = vunpack.c.l.b16 %v342
    %v365 = vunpack.c.l.b16 %v343
    %v366 = vunpack.c.l.b16 %v344
    %v367 = vunpack.c.l.b16 %v345
    %v368 = vunpack.c.l.b16 %v346
    %v369 = vunpack.c.l.b16 %v347
    %v370 = vunpack.c.l.b16 %v348
    %v371 = vpack.c.b16 %v364, %v363
    %v372 = vpack.c.b16 %v366, %v365
    %v373 = vpack.c.b16 %v368, %v367
    %v374 = vpack.c.b16 %v370, %v369
    %v380 = vsel %vm176, %v353, 0
    %v383 = vsel %vm176, %v354, 0
    %385 = vmatprep.subr.bf16.mxu0 0
    %386 = vmatpush1.bf16.msra.mxu0 0
    %387 = vmatprep.subr.bf16.mxu0 0
    %388 = vmatpush1.bf16.msra.mxu0 0
    %389 = vmatprep.subr.bf16.mxu0 0
    %390 = vmatpush1.bf16.msra.mxu0 0
    %391 = vmatprep.subr.bf16.mxu0 0
    %392 = vmatpush1.bf16.msra.mxu0 0
    %393 = vmatprep.subr.bf16.mxu0 0
    %394 = vmatpush1.bf16.msra.mxu0 %v374
    %395 = vmatprep.subr.bf16.mxu0 0
    %396 = vmatpush1.bf16.msra.mxu0 %v373
    %397 = vmatprep.subr.bf16.mxu0 0
    %398 = vmatpush1.bf16.msra.mxu0 %v372
    %399 = vmatprep.subr.bf16.mxu0 0
    %400 = vmatpush1.bf16.msra.mxu0 %v371
    %401 = vmatprep.subr.bf16.mxu0 0
    %402 = vmatpush2.bf16.msra.mxu0 0
    %403 = vmatprep.subr.bf16.mxu0 0
    %404 = vmatpush2.bf16.msra.mxu0 0
    %405 = vmatprep.subr.bf16.mxu0 0
    %406 = vmatpush2.bf16.msra.mxu0 0
    %407 = vmatprep.subr.bf16.mxu0 0
    %408 = vmatpush2.bf16.msra.mxu0 0
    %409 = vmatprep.subr.bf16.mxu0 0
    %410 = vmatpush2.bf16.msra.mxu0 0
    %411 = vmatprep.subr.bf16.mxu0 0
    %412 = vmatpush2.bf16.msra.mxu0 0
    %413 = vmatprep.subr.bf16.mxu0 0
    %414 = vmatpush2.bf16.msra.mxu0 0
    %415 = vmatprep.subr.bf16.mxu0 0
    %416 = vmatpush2.bf16.msra.mxu0 0
    %417 = vmatprep.mubr.bf16.mxu0 0
    %418 = vmatmul.mubr.bf16.gmra.mxu0 %v380
    %v419 = vpop.f32.mrf.mxu0
    %v420 = vadd.f32 0.0, %v419
    %v421 = vpop.f32.mrf.mxu0
    %v422 = vpop.f32.mrf.mxu0
    %v423 = vadd.f32 0.0, %v422
    %v424 = vpop.f32.mrf.mxu0
    %425 = vmatprep.mubr.bf16.mxu0 0
    %426 = vmatmul.mubr.bf16.gmra.mxu0 %v383
    %v427 = vpop.f32.mrf.mxu0
    %v428 = vadd.f32 0.0, %v427
    %v429 = vpop.f32.mrf.mxu0
    %v430 = vpop.f32.mrf.mxu0
    %v431 = vadd.f32 0.0, %v430
    %v432 = vpop.f32.mrf.mxu0
    %433 = vdwg.mxu0
    %v434 = vadd.f32 %v307, %v420
    %v435 = vadd.f32 %v310, %v423
    %v436 = vadd.f32 %v315, %v428
    %v437 = vadd.f32 %v318, %v431
    %v438 = vadd.f32 %v434, %v435
    %v439 = vadd.f32 %v438, %v436
    %v440 = vadd.f32 %v439, %v437
    %v441 = vrot.slane %v440, 4
    %v442 = vadd.f32 %v440, %v441
    %v443 = vrot.slane %v442, 2
    %v444 = vadd.f32 %v442, %v443
    %v445 = vrot.slane %v444, 1
    %v446 = vadd.f32 %v444, %v445
    %v447 = vmul.f32 %v434, %v434
    %v448 = vmul.f32 %v435, %v435
    %v449 = vmul.f32 %v436, %v436
    %v450 = vmul.f32 %v437, %v437
    %v451 = vadd.f32 %v447, %v448
    %v452 = vadd.f32 %v451, %v449
    %v453 = vadd.f32 %v452, %v450
    %v454 = vrot.slane %v453, 4
    %v455 = vadd.f32 %v453, %v454
    %v456 = vrot.slane %v455, 2
    %v457 = vadd.f32 %v455, %v456
    %v458 = vrot.slane %v457, 1
    %v459 = vadd.f32 %v457, %v458
    %v460 = vld [vmem:[#allocation7] sm:$0xff]
    %v461 = vld [vmem:[#allocation7 + $0x8] sm:$0xff]
    %v462 = vld [vmem:[#allocation7 + $0x10] sm:$0xff]
    %v463 = vld [vmem:[#allocation7 + $0x18] sm:$0xff]
    %v464 = vld [vmem:[#allocation7 + $0x20] sm:$0xff]
    %v465 = vld [vmem:[#allocation7 + $0x28] sm:$0xff]
    %v466 = vld [vmem:[#allocation7 + $0x30] sm:$0xff]
    %v467 = vld [vmem:[#allocation7 + $0x38] sm:$0xff]
    %v468 = vld [vmem:[#allocation7 + $0x40] sm:$0xff]
    %v469 = vld [vmem:[#allocation7 + $0x48] sm:$0xff]
    %v470 = vld [vmem:[#allocation7 + $0x50] sm:$0xff]
    %v471 = vld [vmem:[#allocation7 + $0x58] sm:$0xff]
    %v472 = vld [vmem:[#allocation7 + $0x60] sm:$0xff]
    %v473 = vld [vmem:[#allocation7 + $0x68] sm:$0xff]
    %v474 = vld [vmem:[#allocation7 + $0x70] sm:$0xff]
    %v475 = vld [vmem:[#allocation7 + $0x78] sm:$0xff]
    %476 = vmatprep.subr.mxu0 0.0
    %477 = vmatpush1.msra.mxu0 %v475
    %478 = vmatprep.subr.mxu0 0.0
    %479 = vmatpush1.msra.mxu0 %v474
    %480 = vmatprep.subr.mxu0 0.0
    %481 = vmatpush1.msra.mxu0 %v473
    %482 = vmatprep.subr.mxu0 0.0
    %483 = vmatpush1.msra.mxu0 %v472
    %484 = vmatprep.subr.mxu0 0.0
    %485 = vmatpush1.msra.mxu0 %v471
    %486 = vmatprep.subr.mxu0 0.0
    %487 = vmatpush1.msra.mxu0 %v470
    %488 = vmatprep.subr.mxu0 0.0
    %489 = vmatpush1.msra.mxu0 %v469
    %490 = vmatprep.subr.mxu0 0.0
    %491 = vmatpush1.msra.mxu0 %v468
    %492 = vmatprep.subr.mxu0 0.0
    %493 = vmatpush1.msra.mxu0 %v467
    %494 = vmatprep.subr.mxu0 0.0
    %495 = vmatpush1.msra.mxu0 %v466
    %496 = vmatprep.subr.mxu0 0.0
    %497 = vmatpush1.msra.mxu0 %v465
    %498 = vmatprep.subr.mxu0 0.0
    %499 = vmatpush1.msra.mxu0 %v464
    %500 = vmatprep.subr.mxu0 0.0
    %501 = vmatpush1.msra.mxu0 %v463
    %502 = vmatprep.subr.mxu0 0.0
    %503 = vmatpush1.msra.mxu0 %v462
    %504 = vmatprep.subr.mxu0 0.0
    %505 = vmatpush1.msra.mxu0 %v461
    %506 = vmatprep.subr.mxu0 0.0
    %507 = vmatpush1.msra.mxu0 %v460
    %508 = vmatprep.subr.mxu0 0.0
    %509 = vmatpush2.msra.mxu0 0.0
    %510 = vmatprep.subr.mxu0 0.0
    %511 = vmatpush2.msra.mxu0 0.0
    %512 = vmatprep.subr.mxu0 0.0
    %513 = vmatpush2.msra.mxu0 0.0
    %514 = vmatprep.subr.mxu0 0.0
    %515 = vmatpush2.msra.mxu0 0.0
    %516 = vmatprep.subr.mxu0 0.0
    %517 = vmatpush2.msra.mxu0 0.0
    %518 = vmatprep.subr.mxu0 0.0
    %519 = vmatpush2.msra.mxu0 0.0
    %520 = vmatprep.subr.mxu0 0.0
    %521 = vmatpush2.msra.mxu0 0.0
    %522 = vmatprep.subr.mxu0 0.0
    %523 = vmatpush2.msra.mxu0 0.0
    %524 = vmatprep.subr.mxu0 0.0
    %525 = vmatpush2.msra.mxu0 0.0
    %526 = vmatprep.subr.mxu0 0.0
    %527 = vmatpush2.msra.mxu0 0.0
    %528 = vmatprep.subr.mxu0 0.0
    %529 = vmatpush2.msra.mxu0 0.0
    %530 = vmatprep.subr.mxu0 0.0
    %531 = vmatpush2.msra.mxu0 0.0
    %532 = vmatprep.subr.mxu0 0.0
    %533 = vmatpush2.msra.mxu0 0.0
    %534 = vmatprep.subr.mxu0 0.0
    %535 = vmatpush2.msra.mxu0 0.0
    %536 = vmatprep.subr.mxu0 0.0
    %537 = vmatpush2.msra.mxu0 0.0
    %538 = vmatprep.subr.mxu0 0.0
    %539 = vmatpush2.msra.mxu0 0.0
    %540 = vmatprep.mubr.f32.mxu0 0.0
    %541 = vmatmul.mubr.f32.gmra.mxu0 %v446
    %v542 = vpop.f32.mrf.mxu0
    %v543 = vadd.f32 0.0, %v542
    %v544 = vpop.f32.mrf.mxu0
    %545 = vdwg.mxu0
    %v546 = vmul.f32 %v543, 0.001953125
    %547 = vmatprep.subr.mxu0 0.0
    %548 = vmatpush1.msra.mxu0 %v475
    %549 = vmatprep.subr.mxu0 0.0
    %550 = vmatpush1.msra.mxu0 %v474
    %551 = vmatprep.subr.mxu0 0.0
    %552 = vmatpush1.msra.mxu0 %v473
    %553 = vmatprep.subr.mxu0 0.0
    %554 = vmatpush1.msra.mxu0 %v472
    %555 = vmatprep.subr.mxu0 0.0
    %556 = vmatpush1.msra.mxu0 %v471
    %557 = vmatprep.subr.mxu0 0.0
    %558 = vmatpush1.msra.mxu0 %v470
    %559 = vmatprep.subr.mxu0 0.0
    %560 = vmatpush1.msra.mxu0 %v469
    %561 = vmatprep.subr.mxu0 0.0
    %562 = vmatpush1.msra.mxu0 %v468
    %563 = vmatprep.subr.mxu0 0.0
    %564 = vmatpush1.msra.mxu0 %v467
    %565 = vmatprep.subr.mxu0 0.0
    %566 = vmatpush1.msra.mxu0 %v466
    %567 = vmatprep.subr.mxu0 0.0
    %568 = vmatpush1.msra.mxu0 %v465
    %569 = vmatprep.subr.mxu0 0.0
    %570 = vmatpush1.msra.mxu0 %v464
    %571 = vmatprep.subr.mxu0 0.0
    %572 = vmatpush1.msra.mxu0 %v463
    %573 = vmatprep.subr.mxu0 0.0
    %574 = vmatpush1.msra.mxu0 %v462
    %575 = vmatprep.subr.mxu0 0.0
    %576 = vmatpush1.msra.mxu0 %v461
    %577 = vmatprep.subr.mxu0 0.0
    %578 = vmatpush1.msra.mxu0 %v460
    %579 = vmatprep.subr.mxu0 0.0
    %580 = vmatpush2.msra.mxu0 0.0
    %581 = vmatprep.subr.mxu0 0.0
    %582 = vmatpush2.msra.mxu0 0.0
    %583 = vmatprep.subr.mxu0 0.0
    %584 = vmatpush2.msra.mxu0 0.0
    %585 = vmatprep.subr.mxu0 0.0
    %586 = vmatpush2.msra.mxu0 0.0
    %587 = vmatprep.subr.mxu0 0.0
    %588 = vmatpush2.msra.mxu0 0.0
    %589 = vmatprep.subr.mxu0 0.0
    %590 = vmatpush2.msra.mxu0 0.0
    %591 = vmatprep.subr.mxu0 0.0
    %592 = vmatpush2.msra.mxu0 0.0
    %593 = vmatprep.subr.mxu0 0.0
    %594 = vmatpush2.msra.mxu0 0.0
    %595 = vmatprep.subr.mxu0 0.0
    %596 = vmatpush2.msra.mxu0 0.0
    %597 = vmatprep.subr.mxu0 0.0
    %598 = vmatpush2.msra.mxu0 0.0
    %599 = vmatprep.subr.mxu0 0.0
    %600 = vmatpush2.msra.mxu0 0.0
    %601 = vmatprep.subr.mxu0 0.0
    %602 = vmatpush2.msra.mxu0 0.0
    %603 = vmatprep.subr.mxu0 0.0
    %604 = vmatpush2.msra.mxu0 0.0
    %605 = vmatprep.subr.mxu0 0.0
    %606 = vmatpush2.msra.mxu0 0.0
    %607 = vmatprep.subr.mxu0 0.0
    %608 = vmatpush2.msra.mxu0 0.0
    %609 = vmatprep.subr.mxu0 0.0
    %610 = vmatpush2.msra.mxu0 0.0
    %611 = vmatprep.mubr.f32.mxu0 0.0
    %612 = vmatmul.mubr.f32.gmra.mxu0 %v459
    %v613 = vpop.f32.mrf.mxu0
    %v614 = vadd.f32 0.0, %v613
    %v615 = vpop.f32.mrf.mxu0
    %616 = vdwg.mxu0
    %v617 = vmul.f32 %v614, 0.001953125
    %v618 = vmul.f32 %v546, %v546
    %v619 = vsub.f32 %v617, %v618
    %v620 = vmax.f32 %v619, 0.0
    %v621 = vlaneseq
    %v622 = vshrl.u32 %v621, 7
    %v623 = vsub.s32 0, %v622
    %v624 = vrot.slane %v546, %v623
    %v625 = vsub.f32 %v434, %v624
    %v626 = vsub.f32 %v435, %v624
    %v627 = vsub.f32 %v436, %v624
    %v628 = vsub.f32 %v437, %v624
    %v629 = vadd.f32 %v620, 1e-05
    %v630 = vrsqrt.pop %v629
    %v631 = vlaneseq
    %v632 = vshrl.u32 %v631, 7
    %v633 = vsub.s32 0, %v632
    %v634 = vrot.slane %v630, %v633
    %v635 = vmul.f32 %v625, %v634
    %v636 = vmul.f32 %v626, %v634
    %v637 = vmul.f32 %v627, %v634
    %v638 = vmul.f32 %v628, %v634
    %v639 = vld [vmem:[%s3] sm:$0x1]
    %v641 = vlaneseq
    %v642 = vshrl.u32 %v641, 7
    %v643 = vsub.s32 0, %v642
    %v644 = vrot.slane %v639, %v643
    %v646 = vmul.f32 %v635, %v644
    %v647 = vmul.f32 %v636, %v644
    %v648 = vmul.f32 %v637, %v644
    %v649 = vmul.f32 %v638, %v644
    %v650 = vld [vmem:[%s4] sm:$0x1]
    %v652 = vlaneseq
    %v653 = vshrl.u32 %v652, 7
    %v654 = vsub.s32 0, %v653
    %v655 = vrot.slane %v650, %v654
    %v657 = vadd.f32 %v646, %v655
    %v658 = vadd.f32 %v647, %v655
    %v659 = vadd.f32 %v648, %v655
    %v660 = vadd.f32 %v649, %v655
    %v661 = vmax.f32 %v657, 0.0
    %v662 = vmax.f32 %v658, 0.0
    %v663 = vmax.f32 %v659, 0.0
    %v664 = vmax.f32 %v660, 0.0
    %v665 = vpack.c.bf16 %v662, %v661
    %v666 = vpack.c.bf16 %v664, %v663
    %v668 = vshrl.u32 %v665, 16
    %v670 = vrot.slane %v668, 7
    %v671 = vshll.u32 %v665, 16
    %v673 = vor.u32 %v670, %v671
    %v675 = vshrl.u32 %v666, 16
    %v677 = vrot.slane %v675, 7
    %v678 = vshll.u32 %v666, 16
    %v680 = vor.u32 %v677, %v678
    %vm685 = vcmask 1040384
    %vm686 = vsmask.f32 256
    %vm687 = vmand %vm685, %vm686
    %v688 = vsel %vm687, 0, %v673
    %v689 = vsel %vm687, 0, %v680
    %v690 = vsel %vm687, %v670, 0
    %v691 = vsel %vm687, %v677, 0
    %v692 = vld [vmem:[#allocation5] sm:$0xf]
    %v693 = vld [vmem:[#allocation5 + $0x4] sm:$0xf]
    %v694 = vld [vmem:[#allocation5 + $0x8] sm:$0xf]
    %v695 = vld [vmem:[#allocation5 + $0xc] sm:$0xf]
    %v696 = vld [vmem:[#allocation5 + $0x10] sm:$0xf]
    %v697 = vld [vmem:[#allocation5 + $0x14] sm:$0xf]
    %v698 = vld [vmem:[#allocation5 + $0x18] sm:$0xf]
    %v699 = vld [vmem:[#allocation5 + $0x1c] sm:$0xf]
    %v700 = vld [vmem:[#allocation5 + $0x20] sm:$0xf]
    %v701 = vld [vmem:[#allocation5 + $0x24] sm:$0xf]
    %v702 = vld [vmem:[#allocation5 + $0x28] sm:$0xf]
    %v703 = vld [vmem:[#allocation5 + $0x2c] sm:$0xf]
    %v704 = vld [vmem:[#allocation5 + $0x30] sm:$0xf]
    %v705 = vld [vmem:[#allocation5 + $0x34] sm:$0xf]
    %v706 = vld [vmem:[#allocation5 + $0x38] sm:$0xf]
    %v707 = vld [vmem:[#allocation5 + $0x3c] sm:$0xf]
    %vm708 = vsmask.f32 7424
    %v710 = vshrl.u32 %v688, 16
    %v712 = vshll.u32 %v688, 16
    %v714 = vrot.slane %v712, 1
    %v715 = vor.u32 %v710, %v714
    %v717 = vshll.u32 %v690, 16
    %v719 = vrot.slane %v717, 1
    %v720 = vsel %vm708, %v715, %v719
    %v722 = vshrl.u32 %v689, 16
    %v724 = vshll.u32 %v689, 16
    %v726 = vrot.slane %v724, 1
    %v727 = vor.u32 %v722, %v726
    %v729 = vshll.u32 %v691, 16
    %v731 = vrot.slane %v729, 1
    %v732 = vsel %vm708, %v727, %v731
    %s735 = scalar_lea.vmem [#allocation5], 64
    %v736 = vld [vmem:[%s735] sm:$0xf]
    %v737 = vld [vmem:[%s735 + $0x4] sm:$0xf]
    %v738 = vld [vmem:[%s735 + $0x8] sm:$0xf]
    %v739 = vld [vmem:[%s735 + $0xc] sm:$0xf]
    %v740 = vld [vmem:[%s735 + $0x10] sm:$0xf]
    %v741 = vld [vmem:[%s735 + $0x14] sm:$0xf]
    %v742 = vld [vmem:[%s735 + $0x18] sm:$0xf]
    %v743 = vld [vmem:[%s735 + $0x1c] sm:$0xf]
    %v744 = vld [vmem:[%s735 + $0x20] sm:$0xf]
    %v745 = vld [vmem:[%s735 + $0x24] sm:$0xf]
    %v746 = vld [vmem:[%s735 + $0x28] sm:$0xf]
    %v747 = vld [vmem:[%s735 + $0x2c] sm:$0xf]
    %v748 = vld [vmem:[%s735 + $0x30] sm:$0xf]
    %v749 = vld [vmem:[%s735 + $0x34] sm:$0xf]
    %v750 = vld [vmem:[%s735 + $0x38] sm:$0xf]
    %v751 = vld [vmem:[%s735 + $0x3c] sm:$0xf]
    %v768 = vunpack.c.l.b16 %v736
    %v769 = vunpack.c.l.b16 %v737
    %v770 = vunpack.c.l.b16 %v738
    %v771 = vunpack.c.l.b16 %v739
    %v772 = vunpack.c.l.b16 %v740
    %v773 = vunpack.c.l.b16 %v741
    %v774 = vunpack.c.l.b16 %v742
    %v775 = vunpack.c.l.b16 %v743
    %v776 = vunpack.c.l.b16 %v744
    %v777 = vunpack.c.l.b16 %v745
    %v778 = vunpack.c.l.b16 %v746
    %v779 = vunpack.c.l.b16 %v747
    %v780 = vunpack.c.l.b16 %v748
    %v781 = vunpack.c.l.b16 %v749
    %v782 = vunpack.c.l.b16 %v750
    %v783 = vunpack.c.l.b16 %v751
    %v784 = vpack.c.b16 %v769, %v768
    %v785 = vpack.c.b16 %v771, %v770
    %v786 = vpack.c.b16 %v773, %v772
    %v787 = vpack.c.b16 %v775, %v774
    %v788 = vpack.c.b16 %v777, %v776
    %v789 = vpack.c.b16 %v779, %v778
    %v790 = vpack.c.b16 %v781, %v780
    %v791 = vpack.c.b16 %v783, %v782
    %800 = vmatprep.subr.bf16.mxu0 0
    %801 = vmatpush1.bf16.msra.mxu0 %v791
    %802 = vmatprep.subr.bf16.mxu0 0
    %803 = vmatpush1.bf16.msra.mxu0 %v790
    %804 = vmatprep.subr.bf16.mxu0 0
    %805 = vmatpush1.bf16.msra.mxu0 %v789
    %806 = vmatprep.subr.bf16.mxu0 0
    %807 = vmatpush1.bf16.msra.mxu0 %v788
    %808 = vmatprep.subr.bf16.mxu0 0
    %809 = vmatpush1.bf16.msra.mxu0 %v787
    %810 = vmatprep.subr.bf16.mxu0 0
    %811 = vmatpush1.bf16.msra.mxu0 %v786
    %812 = vmatprep.subr.bf16.mxu0 0
    %813 = vmatpush1.bf16.msra.mxu0 %v785
    %814 = vmatprep.subr.bf16.mxu0 0
    %815 = vmatpush1.bf16.msra.mxu0 %v784
    %816 = vmatprep.subr.bf16.mxu0 0
    %817 = vmatpush2.bf16.msra.mxu0 0
    %818 = vmatprep.subr.bf16.mxu0 0
    %819 = vmatpush2.bf16.msra.mxu0 0
    %820 = vmatprep.subr.bf16.mxu0 0
    %821 = vmatpush2.bf16.msra.mxu0 0
    %822 = vmatprep.subr.bf16.mxu0 0
    %823 = vmatpush2.bf16.msra.mxu0 0
    %824 = vmatprep.subr.bf16.mxu0 0
    %825 = vmatpush2.bf16.msra.mxu0 0
    %826 = vmatprep.subr.bf16.mxu0 0
    %827 = vmatpush2.bf16.msra.mxu0 0
    %828 = vmatprep.subr.bf16.mxu0 0
    %829 = vmatpush2.bf16.msra.mxu0 0
    %830 = vmatprep.subr.bf16.mxu0 0
    %831 = vmatpush2.bf16.msra.mxu0 0
    %832 = vmatprep.mubr.bf16.mxu0 0
    %833 = vmatmul.mubr.bf16.gmra.mxu0 %v720
    %v834 = vpop.f32.mrf.mxu0
    %v835 = vadd.f32 0.0, %v834
    %v836 = vpop.f32.mrf.mxu0
    %v837 = vpop.f32.mrf.mxu0
    %v838 = vadd.f32 0.0, %v837
    %v839 = vpop.f32.mrf.mxu0
    %840 = vmatprep.mubr.bf16.mxu0 0
    %841 = vmatmul.mubr.bf16.gmra.mxu0 %v732
    %v842 = vpop.f32.mrf.mxu0
    %v843 = vadd.f32 0.0, %v842
    %v844 = vpop.f32.mrf.mxu0
    %v845 = vpop.f32.mrf.mxu0
    %v846 = vadd.f32 0.0, %v845
    %v847 = vpop.f32.mrf.mxu0
    %848 = vdwg.mxu0
    %v865 = vunpack.c.l.b16 %v692
    %v866 = vunpack.c.l.b16 %v693
    %v867 = vunpack.c.l.b16 %v694
    %v868 = vunpack.c.l.b16 %v695
    %v869 = vunpack.c.l.b16 %v696
    %v870 = vunpack.c.l.b16 %v697
    %v871 = vunpack.c.l.b16 %v698
    %v872 = vunpack.c.l.b16 %v699
    %v873 = vunpack.c.l.b16 %v700
    %v874 = vunpack.c.l.b16 %v701
    %v875 = vunpack.c.l.b16 %v702
    %v876 = vunpack.c.l.b16 %v703
    %v877 = vunpack.c.l.b16 %v704
    %v878 = vunpack.c.l.b16 %v705
    %v879 = vunpack.c.l.b16 %v706
    %v880 = vunpack.c.l.b16 %v707
    %v881 = vpack.c.b16 %v866, %v865
    %v882 = vpack.c.b16 %v868, %v867
    %v883 = vpack.c.b16 %v870, %v869
    %v884 = vpack.c.b16 %v872, %v871
    %v885 = vpack.c.b16 %v874, %v873
    %v886 = vpack.c.b16 %v876, %v875
    %v887 = vpack.c.b16 %v878, %v877
    %v888 = vpack.c.b16 %v880, %v879
    %897 = vmatprep.subr.bf16.mxu0 0
    %898 = vmatpush1.bf16.msra.mxu0 %v888
    %899 = vmatprep.subr.bf16.mxu0 0
    %900 = vmatpush1.bf16.msra.mxu0 %v887
    %901 = vmatprep.subr.bf16.mxu0 0
    %902 = vmatpush1.bf16.msra.mxu0 %v886
    %903 = vmatprep.subr.bf16.mxu0 0
    %904 = vmatpush1.bf16.msra.mxu0 %v885
    %905 = vmatprep.subr.bf16.mxu0 0
    %906 = vmatpush1.bf16.msra.mxu0 %v884
    %907 = vmatprep.subr.bf16.mxu0 0
    %908 = vmatpush1.bf16.msra.mxu0 %v883
    %909 = vmatprep.subr.bf16.mxu0 0
    %910 = vmatpush1.bf16.msra.mxu0 %v882
    %911 = vmatprep.subr.bf16.mxu0 0
    %912 = vmatpush1.bf16.msra.mxu0 %v881
    %913 = vmatprep.subr.bf16.mxu0 0
    %914 = vmatpush2.bf16.msra.mxu0 0
    %915 = vmatprep.subr.bf16.mxu0 0
    %916 = vmatpush2.bf16.msra.mxu0 0
    %917 = vmatprep.subr.bf16.mxu0 0
    %918 = vmatpush2.bf16.msra.mxu0 0
    %919 = vmatprep.subr.bf16.mxu0 0
    %920 = vmatpush2.bf16.msra.mxu0 0
    %921 = vmatprep.subr.bf16.mxu0 0
    %922 = vmatpush2.bf16.msra.mxu0 0
    %923 = vmatprep.subr.bf16.mxu0 0
    %924 = vmatpush2.bf16.msra.mxu0 0
    %925 = vmatprep.subr.bf16.mxu0 0
    %926 = vmatpush2.bf16.msra.mxu0 0
    %927 = vmatprep.subr.bf16.mxu0 0
    %928 = vmatpush2.bf16.msra.mxu0 0
    %929 = vmatprep.mubr.bf16.mxu0 0
    %930 = vmatmul.mubr.bf16.gmra.mxu0 %v688
    %v931 = vpop.f32.mrf.mxu0
    %v932 = vadd.f32 %v835, %v931
    %v933 = vpop.f32.mrf.mxu0
    %v934 = vpop.f32.mrf.mxu0
    %v935 = vadd.f32 %v838, %v934
    %v936 = vpop.f32.mrf.mxu0
    %937 = vmatprep.mubr.bf16.mxu0 0
    %938 = vmatmul.mubr.bf16.gmra.mxu0 %v689
    %v939 = vpop.f32.mrf.mxu0
    %v940 = vadd.f32 %v843, %v939
    %v941 = vpop.f32.mrf.mxu0
    %v942 = vpop.f32.mrf.mxu0
    %v943 = vadd.f32 %v846, %v942
    %v944 = vpop.f32.mrf.mxu0
    %945 = vdwg.mxu0
    %vm950 = vcmask 1046528
    %v951 = vrot.slane %v688, 1
    %v952 = vrot.slane %v690, 1
    %v953 = vsel %vm950, %v951, %v952
    %v954 = vrot.slane %v689, 1
    %v955 = vrot.slane %v691, 1
    %v956 = vsel %vm950, %v954, %v955
    %s959 = scalar_lea.vmem [#allocation5], 128
    %v960 = vld [vmem:[%s959] sm:$0xf]
    %v961 = vld [vmem:[%s959 + $0x4] sm:$0xf]
    %v962 = vld [vmem:[%s959 + $0x8] sm:$0xf]
    %v963 = vld [vmem:[%s959 + $0xc] sm:$0xf]
    %v964 = vld [vmem:[%s959 + $0x10] sm:$0xf]
    %v965 = vld [vmem:[%s959 + $0x14] sm:$0xf]
    %v966 = vld [vmem:[%s959 + $0x18] sm:$0xf]
    %v967 = vld [vmem:[%s959 + $0x1c] sm:$0xf]
    %v968 = vld [vmem:[%s959 + $0x20] sm:$0xf]
    %v969 = vld [vmem:[%s959 + $0x24] sm:$0xf]
    %v970 = vld [vmem:[%s959 + $0x28] sm:$0xf]
    %v971 = vld [vmem:[%s959 + $0x2c] sm:$0xf]
    %v972 = vld [vmem:[%s959 + $0x30] sm:$0xf]
    %v973 = vld [vmem:[%s959 + $0x34] sm:$0xf]
    %v974 = vld [vmem:[%s959 + $0x38] sm:$0xf]
    %v975 = vld [vmem:[%s959 + $0x3c] sm:$0xf]
    %v992 = vunpack.c.l.b16 %v960
    %v993 = vunpack.c.l.b16 %v961
    %v994 = vunpack.c.l.b16 %v962
    %v995 = vunpack.c.l.b16 %v963
    %v996 = vunpack.c.l.b16 %v964
    %v997 = vunpack.c.l.b16 %v965
    %v998 = vunpack.c.l.b16 %v966
    %v999 = vunpack.c.l.b16 %v967
    %v1000 = vunpack.c.l.b16 %v968
    %v1001 = vunpack.c.l.b16 %v969
    %v1002 = vunpack.c.l.b16 %v970
    %v1003 = vunpack.c.l.b16 %v971
    %v1004 = vunpack.c.l.b16 %v972
    %v1005 = vunpack.c.l.b16 %v973
    %v1006 = vunpack.c.l.b16 %v974
    %v1007 = vunpack.c.l.b16 %v975
    %v1008 = vpack.c.b16 %v993, %v992
    %v1009 = vpack.c.b16 %v995, %v994
    %v1010 = vpack.c.b16 %v997, %v996
    %v1011 = vpack.c.b16 %v999, %v998
    %v1012 = vpack.c.b16 %v1001, %v1000
    %v1013 = vpack.c.b16 %v1003, %v1002
    %v1014 = vpack.c.b16 %v1005, %v1004
    %v1015 = vpack.c.b16 %v1007, %v1006
    %1024 = vmatprep.subr.bf16.mxu0 0
    %1025 = vmatpush1.bf16.msra.mxu0 %v1015
    %1026 = vmatprep.subr.bf16.mxu0 0
    %1027 = vmatpush1.bf16.msra.mxu0 %v1014
    %1028 = vmatprep.subr.bf16.mxu0 0
    %1029 = vmatpush1.bf16.msra.mxu0 %v1013
    %1030 = vmatprep.subr.bf16.mxu0 0
    %1031 = vmatpush1.bf16.msra.mxu0 %v1012
    %1032 = vmatprep.subr.bf16.mxu0 0
    %1033 = vmatpush1.bf16.msra.mxu0 %v1011
    %1034 = vmatprep.subr.bf16.mxu0 0
    %1035 = vmatpush1.bf16.msra.mxu0 %v1010
    %1036 = vmatprep.subr.bf16.mxu0 0
    %1037 = vmatpush1.bf16.msra.mxu0 %v1009
    %1038 = vmatprep.subr.bf16.mxu0 0
    %1039 = vmatpush1.bf16.msra.mxu0 %v1008
    %1040 = vmatprep.subr.bf16.mxu0 0
    %1041 = vmatpush2.bf16.msra.mxu0 0
    %1042 = vmatprep.subr.bf16.mxu0 0
    %1043 = vmatpush2.bf16.msra.mxu0 0
    %1044 = vmatprep.subr.bf16.mxu0 0
    %1045 = vmatpush2.bf16.msra.mxu0 0
    %1046 = vmatprep.subr.bf16.mxu0 0
    %1047 = vmatpush2.bf16.msra.mxu0 0
    %1048 = vmatprep.subr.bf16.mxu0 0
    %1049 = vmatpush2.bf16.msra.mxu0 0
    %1050 = vmatprep.subr.bf16.mxu0 0
    %1051 = vmatpush2.bf16.msra.mxu0 0
    %1052 = vmatprep.subr.bf16.mxu0 0
    %1053 = vmatpush2.bf16.msra.mxu0 0
    %1054 = vmatprep.subr.bf16.mxu0 0
    %1055 = vmatpush2.bf16.msra.mxu0 0
    %1056 = vmatprep.mubr.bf16.mxu0 0
    %1057 = vmatmul.mubr.bf16.gmra.mxu0 %v953
    %v1058 = vpop.f32.mrf.mxu0
    %v1059 = vadd.f32 0.0, %v1058
    %v1060 = vpop.f32.mrf.mxu0
    %v1061 = vpop.f32.mrf.mxu0
    %v1062 = vadd.f32 0.0, %v1061
    %v1063 = vpop.f32.mrf.mxu0
    %1064 = vmatprep.mubr.bf16.mxu0 0
    %1065 = vmatmul.mubr.bf16.gmra.mxu0 %v956
    %v1066 = vpop.f32.mrf.mxu0
    %v1067 = vadd.f32 0.0, %v1066
    %v1068 = vpop.f32.mrf.mxu0
    %v1069 = vpop.f32.mrf.mxu0
    %v1070 = vadd.f32 0.0, %v1069
    %v1071 = vpop.f32.mrf.mxu0
    %1072 = vdwg.mxu0
    %v1073 = vadd.f32 %v932, %v1059
    %v1074 = vadd.f32 %v935, %v1062
    %v1075 = vadd.f32 %v940, %v1067
    %v1076 = vadd.f32 %v943, %v1070
    %v1077 = vadd.f32 %v1073, %v1074
    %v1078 = vadd.f32 %v1077, %v1075
    %v1079 = vadd.f32 %v1078, %v1076
    %v1080 = vrot.slane %v1079, 4
    %v1081 = vadd.f32 %v1079, %v1080
    %v1082 = vrot.slane %v1081, 2
    %v1083 = vadd.f32 %v1081, %v1082
    %v1084 = vrot.slane %v1083, 1
    %v1085 = vadd.f32 %v1083, %v1084
    %v1086 = vmul.f32 %v1073, %v1073
    %v1087 = vmul.f32 %v1074, %v1074
    %v1088 = vmul.f32 %v1075, %v1075
    %v1089 = vmul.f32 %v1076, %v1076
    %v1090 = vadd.f32 %v1086, %v1087
    %v1091 = vadd.f32 %v1090, %v1088
    %v1092 = vadd.f32 %v1091, %v1089
    %v1093 = vrot.slane %v1092, 4
    %v1094 = vadd.f32 %v1092, %v1093
    %v1095 = vrot.slane %v1094, 2
    %v1096 = vadd.f32 %v1094, %v1095
    %v1097 = vrot.slane %v1096, 1
    %v1098 = vadd.f32 %v1096, %v1097
    %1099 = vmatprep.subr.mxu0 0.0
    %1100 = vmatpush1.msra.mxu0 %v475
    %1101 = vmatprep.subr.mxu0 0.0
    %1102 = vmatpush1.msra.mxu0 %v474
    %1103 = vmatprep.subr.mxu0 0.0
    %1104 = vmatpush1.msra.mxu0 %v473
    %1105 = vmatprep.subr.mxu0 0.0
    %1106 = vmatpush1.msra.mxu0 %v472
    %1107 = vmatprep.subr.mxu0 0.0
    %1108 = vmatpush1.msra.mxu0 %v471
    %1109 = vmatprep.subr.mxu0 0.0
    %1110 = vmatpush1.msra.mxu0 %v470
    %1111 = vmatprep.subr.mxu0 0.0
    %1112 = vmatpush1.msra.mxu0 %v469
    %1113 = vmatprep.subr.mxu0 0.0
    %1114 = vmatpush1.msra.mxu0 %v468
    %1115 = vmatprep.subr.mxu0 0.0
    %1116 = vmatpush1.msra.mxu0 %v467
    %1117 = vmatprep.subr.mxu0 0.0
    %1118 = vmatpush1.msra.mxu0 %v466
    %1119 = vmatprep.subr.mxu0 0.0
    %1120 = vmatpush1.msra.mxu0 %v465
    %1121 = vmatprep.subr.mxu0 0.0
    %1122 = vmatpush1.msra.mxu0 %v464
    %1123 = vmatprep.subr.mxu0 0.0
    %1124 = vmatpush1.msra.mxu0 %v463
    %1125 = vmatprep.subr.mxu0 0.0
    %1126 = vmatpush1.msra.mxu0 %v462
    %1127 = vmatprep.subr.mxu0 0.0
    %1128 = vmatpush1.msra.mxu0 %v461
    %1129 = vmatprep.subr.mxu0 0.0
    %1130 = vmatpush1.msra.mxu0 %v460
    %1131 = vmatprep.subr.mxu0 0.0
    %1132 = vmatpush2.msra.mxu0 0.0
    %1133 = vmatprep.subr.mxu0 0.0
    %1134 = vmatpush2.msra.mxu0 0.0
    %1135 = vmatprep.subr.mxu0 0.0
    %1136 = vmatpush2.msra.mxu0 0.0
    %1137 = vmatprep.subr.mxu0 0.0
    %1138 = vmatpush2.msra.mxu0 0.0
    %1139 = vmatprep.subr.mxu0 0.0
    %1140 = vmatpush2.msra.mxu0 0.0
    %1141 = vmatprep.subr.mxu0 0.0
    %1142 = vmatpush2.msra.mxu0 0.0
    %1143 = vmatprep.subr.mxu0 0.0
    %1144 = vmatpush2.msra.mxu0 0.0
    %1145 = vmatprep.subr.mxu0 0.0
    %1146 = vmatpush2.msra.mxu0 0.0
    %1147 = vmatprep.subr.mxu0 0.0
    %1148 = vmatpush2.msra.mxu0 0.0
    %1149 = vmatprep.subr.mxu0 0.0
    %1150 = vmatpush2.msra.mxu0 0.0
    %1151 = vmatprep.subr.mxu0 0.0
    %1152 = vmatpush2.msra.mxu0 0.0
    %1153 = vmatprep.subr.mxu0 0.0
    %1154 = vmatpush2.msra.mxu0 0.0
    %1155 = vmatprep.subr.mxu0 0.0
    %1156 = vmatpush2.msra.mxu0 0.0
    %1157 = vmatprep.subr.mxu0 0.0
    %1158 = vmatpush2.msra.mxu0 0.0
    %1159 = vmatprep.subr.mxu0 0.0
    %1160 = vmatpush2.msra.mxu0 0.0
    %1161 = vmatprep.subr.mxu0 0.0
    %1162 = vmatpush2.msra.mxu0 0.0
    %1163 = vmatprep.mubr.f32.mxu0 0.0
    %1164 = vmatmul.mubr.f32.gmra.mxu0 %v1085
    %v1165 = vpop.f32.mrf.mxu0
    %v1166 = vadd.f32 0.0, %v1165
    %v1167 = vpop.f32.mrf.mxu0
    %1168 = vdwg.mxu0
    %v1169 = vmul.f32 %v1166, 0.001953125
    %1170 = vmatprep.subr.mxu0 0.0
    %1171 = vmatpush1.msra.mxu0 %v475
    %1172 = vmatprep.subr.mxu0 0.0
    %1173 = vmatpush1.msra.mxu0 %v474
    %1174 = vmatprep.subr.mxu0 0.0
    %1175 = vmatpush1.msra.mxu0 %v473
    %1176 = vmatprep.subr.mxu0 0.0
    %1177 = vmatpush1.msra.mxu0 %v472
    %1178 = vmatprep.subr.mxu0 0.0
    %1179 = vmatpush1.msra.mxu0 %v471
    %1180 = vmatprep.subr.mxu0 0.0
    %1181 = vmatpush1.msra.mxu0 %v470
    %1182 = vmatprep.subr.mxu0 0.0
    %1183 = vmatpush1.msra.mxu0 %v469
    %1184 = vmatprep.subr.mxu0 0.0
    %1185 = vmatpush1.msra.mxu0 %v468
    %1186 = vmatprep.subr.mxu0 0.0
    %1187 = vmatpush1.msra.mxu0 %v467
    %1188 = vmatprep.subr.mxu0 0.0
    %1189 = vmatpush1.msra.mxu0 %v466
    %1190 = vmatprep.subr.mxu0 0.0
    %1191 = vmatpush1.msra.mxu0 %v465
    %1192 = vmatprep.subr.mxu0 0.0
    %1193 = vmatpush1.msra.mxu0 %v464
    %1194 = vmatprep.subr.mxu0 0.0
    %1195 = vmatpush1.msra.mxu0 %v463
    %1196 = vmatprep.subr.mxu0 0.0
    %1197 = vmatpush1.msra.mxu0 %v462
    %1198 = vmatprep.subr.mxu0 0.0
    %1199 = vmatpush1.msra.mxu0 %v461
    %1200 = vmatprep.subr.mxu0 0.0
    %1201 = vmatpush1.msra.mxu0 %v460
    %1202 = vmatprep.subr.mxu0 0.0
    %1203 = vmatpush2.msra.mxu0 0.0
    %1204 = vmatprep.subr.mxu0 0.0
    %1205 = vmatpush2.msra.mxu0 0.0
    %1206 = vmatprep.subr.mxu0 0.0
    %1207 = vmatpush2.msra.mxu0 0.0
    %1208 = vmatprep.subr.mxu0 0.0
    %1209 = vmatpush2.msra.mxu0 0.0
    %1210 = vmatprep.subr.mxu0 0.0
    %1211 = vmatpush2.msra.mxu0 0.0
    %1212 = vmatprep.subr.mxu0 0.0
    %1213 = vmatpush2.msra.mxu0 0.0
    %1214 = vmatprep.subr.mxu0 0.0
    %1215 = vmatpush2.msra.mxu0 0.0
    %1216 = vmatprep.subr.mxu0 0.0
    %1217 = vmatpush2.msra.mxu0 0.0
    %1218 = vmatprep.subr.mxu0 0.0
    %1219 = vmatpush2.msra.mxu0 0.0
    %1220 = vmatprep.subr.mxu0 0.0
    %1221 = vmatpush2.msra.mxu0 0.0
    %1222 = vmatprep.subr.mxu0 0.0
    %1223 = vmatpush2.msra.mxu0 0.0
    %1224 = vmatprep.subr.mxu0 0.0
    %1225 = vmatpush2.msra.mxu0 0.0
    %1226 = vmatprep.subr.mxu0 0.0
    %1227 = vmatpush2.msra.mxu0 0.0
    %1228 = vmatprep.subr.mxu0 0.0
    %1229 = vmatpush2.msra.mxu0 0.0
    %1230 = vmatprep.subr.mxu0 0.0
    %1231 = vmatpush2.msra.mxu0 0.0
    %1232 = vmatprep.subr.mxu0 0.0
    %1233 = vmatpush2.msra.mxu0 0.0
    %1234 = vmatprep.mubr.f32.mxu0 0.0
    %1235 = vmatmul.mubr.f32.gmra.mxu0 %v1098
    %v1236 = vpop.f32.mrf.mxu0
    %v1237 = vadd.f32 0.0, %v1236
    %v1238 = vpop.f32.mrf.mxu0
    %1239 = vdwg.mxu0
    %v1240 = vmul.f32 %v1237, 0.001953125
    %v1241 = vmul.f32 %v1169, %v1169
    %v1242 = vsub.f32 %v1240, %v1241
    %v1243 = vmax.f32 %v1242, 0.0
    %v1244 = vlaneseq
    %v1245 = vshrl.u32 %v1244, 7
    %v1246 = vsub.s32 0, %v1245
    %v1247 = vrot.slane %v1169, %v1246
    %v1248 = vsub.f32 %v1073, %v1247
    %v1249 = vsub.f32 %v1074, %v1247
    %v1250 = vsub.f32 %v1075, %v1247
    %v1251 = vsub.f32 %v1076, %v1247
    %v1252 = vadd.f32 %v1243, 1e-05
    %v1253 = vrsqrt.pop %v1252
    %v1254 = vlaneseq
    %v1255 = vshrl.u32 %v1254, 7
    %v1256 = vsub.s32 0, %v1255
    %v1257 = vrot.slane %v1253, %v1256
    %v1258 = vmul.f32 %v1248, %v1257
    %v1259 = vmul.f32 %v1249, %v1257
    %v1260 = vmul.f32 %v1250, %v1257
    %v1261 = vmul.f32 %v1251, %v1257
    %v1262 = vld [vmem:[%s5] sm:$0x1]
    %v1264 = vlaneseq
    %v1265 = vshrl.u32 %v1264, 7
    %v1266 = vsub.s32 0, %v1265
    %v1267 = vrot.slane %v1262, %v1266
    %v1269 = vmul.f32 %v1258, %v1267
    %v1270 = vmul.f32 %v1259, %v1267
    %v1271 = vmul.f32 %v1260, %v1267
    %v1272 = vmul.f32 %v1261, %v1267
    %v1273 = vld [vmem:[%s6] sm:$0x1]
    %v1275 = vlaneseq
    %v1276 = vshrl.u32 %v1275, 7
    %v1277 = vsub.s32 0, %v1276
    %v1278 = vrot.slane %v1273, %v1277
    %v1280 = vadd.f32 %v1269, %v1278
    %v1281 = vadd.f32 %v1270, %v1278
    %v1282 = vadd.f32 %v1271, %v1278
    %v1283 = vadd.f32 %v1272, %v1278
    %v1284 = vmax.f32 %v1280, 0.0
    %v1285 = vmax.f32 %v1281, 0.0
    %v1286 = vmax.f32 %v1282, 0.0
    %v1287 = vmax.f32 %v1283, 0.0
    %1288 = vst [vmem:[#allocation8] sm:$0xff] %v1284
    %1289 = vst [vmem:[#allocation8 + $0x8] sm:$0xff] %v1285
    %1290 = vst [vmem:[#allocation8 + $0x10] sm:$0xff] %v1286
    %1291 = vst [vmem:[#allocation8 + $0x18] sm:$0xff] %v1287
    // Predicated region
    $region46: #{tpu_custom_call.1} parent=1 // pred_check
      _
    $region47: #{tpu_custom_call.1} parent=1 // pred_check_branch
      %1293 = sbr.rel (0) target = $region49
    $region48: #{tpu_custom_call.1} parent=1 // pred_region
      %s1295 = ssub.s32 512, 512
      %1296 = vsyncadd [#allocation4], %s1295
      %s1297 = sshll.u32 [#allocation8], 4
      %s1298 = int_to_ptr.vmem [resolvable:$true] %s1297
      %1303 = dma.vmem_to_hbm [thread:$0]  %s1298, 512, %s8, [#allocation4], 128, 128, 8
    $region49: #{tpu_custom_call.1} parent=1 // pred_fallthru
      _
    // Predicated region
    $region50: #{tpu_custom_call.1} parent=1 // pred_check
      _
    $region51: #{tpu_custom_call.1} parent=1 // pred_check_branch
      %1305 = sbr.rel (0) target = $region53
    $region52: #{tpu_custom_call.1} parent=1 // pred_region
      %1306 = dma.done [#allocation4], 512
    $region53: #{tpu_custom_call.1} parent=1 // pred_fallthru
      _
    %1307 = vsyncpa [#allocation3], 1
    %1308 = vsyncpa [#allocation6], 1
    %1309 = vsyncpa [#allocation4], 1

</llo_original>
